<compile_context>
chip_gen: v7x
topology: tpu7x:2x2x1
jax: 0.10.0
libtpu: 0.0.40
codegen_flags: <defaults>
</compile_context>

<pallas_src>
import functools

import jax
import jax.numpy as jnp
from jax.experimental import pallas as pl
from jax.experimental.pallas import tpu as pltpu


def _aspp_kernel(xp_ref, w_ref, scale_ref, shift_ref, out_ref, *,
                 Hout, Wout8, Wp_pad, Cin, TN, K, dilation, row_tile,
                 compute_dtype):
    # xp_ref:    (Hp, Wp_pad, Cin)  zero-padded NHWC image (W 8-aligned)
    # w_ref:     (K*K, Cin, TN)     per-tap conv weights (tap t = ky*K + kx)
    # scale_ref: (1, TN)            folded BN scale  (gamma / sqrt(var + eps))
    # shift_ref: (1, TN)            folded BN shift  (beta - mean * scale)
    # out_ref:   (Hout, Wout8, TN)
    bn_scale = scale_ref[...]                        # (1, TN) f32, loaded once
    bn_shift = shift_ref[...]

    def do_chunk(r0, rows):
        # Per-chunk f32 accumulator (lives mostly in vregs for small chunks).
        acc = jnp.zeros((rows * Wout8, TN), jnp.float32)
        for ky in range(K):                          # static unroll over taps
            oy = ky * dilation
            # H slicing is on the untiled leading dim -> free at any offset.
            slab = xp_ref[pl.ds(r0 + oy, rows), :, :]        # (rows, Wp_pad, Cin)
            for kx in range(K):
                ox = kx * dilation
                # kx shift via XLU roll (cyclic); used columns never wrap since
                # Wout - 1 + (K-1)*dilation <= Wp - 1 < Wp_pad.
                sh = slab if ox == 0 else pltpu.roll(
                    slab, shift=Wp_pad - ox, axis=1)
                # Offset-0 slice + collapse are tile-aligned (Wout8 % 8 == 0).
                patch = sh[:, :Wout8, :].reshape(rows * Wout8, Cin)
                acc = acc + jnp.dot(
                    patch.astype(compute_dtype), w_ref[ky * K + kx],
                    preferred_element_type=jnp.float32)
        y = jnp.maximum(acc * bn_scale + bn_shift, 0.0)      # BN + ReLU
        out_ref[pl.ds(r0, rows), :, :] = (
            y.reshape(rows, Wout8, TN).astype(out_ref.dtype))

    num_chunks = Hout // row_tile
    rem = Hout - num_chunks * row_tile

    if num_chunks > 0:
        @pl.loop(0, num_chunks)
        def _(c):
            do_chunk(pl.multiple_of(c * row_tile, row_tile), row_tile)
    if rem:
        do_chunk(num_chunks * row_tile, rem)


def aspp_module_pallas(x, weight, gamma, beta, mean, var, *,
                       padding, dilation, eps=1e-5,
                       compute_dtype=jnp.bfloat16, row_tile=8):
    """x: (B, Cin, H, W); weight: (Cout, Cin, K, K) (bias-free atrous conv);
    gamma/beta/mean/var: (Cout,) BatchNorm affine + running stats (eval mode).
    Returns (B, Cout, Hout, Wout) in NCHW, matching the PyTorch module."""
    B, Cin, H, W = x.shape
    Cout, Cin_w, K, K2 = weight.shape
    assert Cin_w == Cin and K == K2, "weight must be (Cout, Cin, K, K)"

    # PyTorch conv output-size arithmetic (stride 1).
    Hout = H + 2 * padding - dilation * (K - 1)
    Wout = W + 2 * padding - dilation * (K - 1)
    assert Hout > 0 and Wout > 0

    Hp = H + 2 * padding
    Wp = W + 2 * padding
    Wp_pad = -(-Wp // 8) * 8      # sublane-align padded width (extra zeros)
    Wout8 = -(-Wout // 8) * 8     # sublane-align output width (sliced off later)

    # NHWC inside the kernel: channels on lanes, W on sublanes, H untiled.
    x_nhwc = jnp.transpose(x, (0, 2, 3, 1))
    xp = jnp.pad(x_nhwc, ((0, 0), (padding, padding),
                          (padding, Wp_pad - W - padding), (0, 0)))

    # Per-tap weights (K*K, Cin, Cout) in the MXU compute dtype.
    w_taps = jnp.transpose(weight, (2, 3, 1, 0)).reshape(K * K, Cin, Cout)
    w_taps = w_taps.astype(compute_dtype)

    # Fold eval-mode BatchNorm into per-channel scale/shift once in the wrapper.
    scale1 = (gamma / jnp.sqrt(var + eps)).astype(jnp.float32)
    shift1 = (beta - mean * scale1).astype(jnp.float32)
    bn_scale = scale1.reshape(1, Cout)
    bn_shift = shift1.reshape(1, Cout)

    # Cout tiling: multiples of 128 keep MXU passes and stores unmasked on all
    # generations; 256 matches the v6e/v7x MXU width; gives megacore balance.
    if Cout % 256 == 0:
        TN = 256
    elif Cout % 128 == 0:
        TN = 128
    else:
        TN = Cout
    n_ct = Cout // TN

    row_tile = max(1, min(row_tile, Hout))

    # Derive the VMEM budget from the hardware instead of hard-coding for v7x.
    try:
        vmem_cap = int(pltpu.get_tpu_info().vmem_capacity_bytes)
    except Exception:
        vmem_cap = 64 * 1024 * 1024
    vmem_limit = min((vmem_cap * 3) // 4, 100 * 1024 * 1024)

    kernel = functools.partial(
        _aspp_kernel, Hout=Hout, Wout8=Wout8, Wp_pad=Wp_pad, Cin=Cin, TN=TN,
        K=K, dilation=dilation, row_tile=row_tile, compute_dtype=compute_dtype)

    out_nhwc = pl.pallas_call(
        kernel,
        out_shape=jax.ShapeDtypeStruct((B, Hout, Wout8, Cout), x.dtype),
        grid=(B, n_ct),
        in_specs=[
            # Per-image padded input block (batch dim squeezed).
            pl.BlockSpec((None, Hp, Wp_pad, Cin), lambda b, n: (b, 0, 0, 0)),
            # Weights / BN params: constant batch index -> DMA'd once per Cout
            # tile and resident in VMEM across batch steps.
            pl.BlockSpec((K * K, Cin, TN), lambda b, n: (0, 0, n)),
            pl.BlockSpec((1, TN), lambda b, n: (0, n)),
            pl.BlockSpec((1, TN), lambda b, n: (0, n)),
        ],
        out_specs=pl.BlockSpec((None, Hout, Wout8, TN),
                               lambda b, n: (b, 0, 0, n)),
        compiler_params=pltpu.CompilerParams(
            dimension_semantics=("parallel", "parallel"),
            vmem_limit_bytes=vmem_limit),
    )(xp, w_taps, bn_scale, bn_shift)

    if Wout8 != Wout:
        out_nhwc = out_nhwc[:, :, :Wout, :]
    return jnp.transpose(out_nhwc, (0, 3, 1, 2))


def aspp_module_ref(x, weight, gamma, beta, mean, var, *,
                    padding, dilation, eps=1e-5, compute_dtype=jnp.float32):
    """Pure-JAX reference mirroring the PyTorch forward (eval-mode BN).
    compute_dtype applies the same operand rounding the kernel's MXU path uses."""
    xc = x.astype(compute_dtype).astype(jnp.float32)
    wc = weight.astype(compute_dtype).astype(jnp.float32)
    y = jax.lax.conv_general_dilated(
        xc, wc, window_strides=(1, 1),
        padding=((padding, padding), (padding, padding)),
        rhs_dilation=(dilation, dilation),
        dimension_numbers=("NCHW", "OIHW", "NCHW"),
        precision=jax.lax.Precision.HIGHEST)
    scale = gamma / jnp.sqrt(var + eps)
    shift = beta - mean * scale
    y = y * scale[None, :, None, None] + shift[None, :, None, None]
    return jnp.maximum(y, 0.0).astype(x.dtype)


if __name__ == "__main__":
    key = jax.random.PRNGKey(0)
    kx_, kw_, kg_, kb_, km_, kv_ = jax.random.split(key, 6)

    # Small shapes consistent with _ASPPModule(inplanes, planes, 3,
    # padding=dilation, dilation=dilation, BatchNorm2d). Cout=128 keeps the
    # output lane-dense (unmasked stores), like the real ASPP branches.
    B, Cin, H, W = 2, 16, 16, 16
    Cout, K, dilation = 128, 3, 2
    padding = dilation

    x = jax.random.normal(kx_, (B, Cin, H, W), dtype=jnp.float32)

    # Kaiming-normal conv weight (as in _init_weight), bias-free.
    fan_in = Cin * K * K
    weight = (jnp.sqrt(2.0 / fan_in)
              * jax.random.normal(kw_, (Cout, Cin, K, K), dtype=jnp.float32))

    # BatchNorm affine params + running stats (eval-mode BN).
    gamma = 1.0 + 0.1 * jax.random.normal(kg_, (Cout,), dtype=jnp.float32)
    beta = 0.1 * jax.random.normal(kb_, (Cout,), dtype=jnp.float32)
    mean = 0.1 * jax.random.normal(km_, (Cout,), dtype=jnp.float32)
    var = 1.0 + 0.1 * jnp.abs(jax.random.normal(kv_, (Cout,), dtype=jnp.float32))

    out = aspp_module_pallas(x, weight, gamma, beta, mean, var,
                             padding=padding, dilation=dilation)
    out = jax.block_until_ready(out)
    assert out.shape == (B, Cout, H, W)

    # Reference with the same bf16 operand rounding (f32 accumulation) as the
    # kernel's MXU path -> tight tolerance.
    ref_bf16 = aspp_module_ref(x, weight, gamma, beta, mean, var,
                               padding=padding, dilation=dilation,
                               compute_dtype=jnp.bfloat16)
    assert jnp.allclose(out, ref_bf16, atol=1e-3, rtol=1e-3), \
        "mismatch vs bf16-rounded reference"

    # Full-f32 reference (original module semantics); loose tolerance covers
    # the bf16 operand rounding used on the MXU.
    ref_f32 = aspp_module_ref(x, weight, gamma, beta, mean, var,
                              padding=padding, dilation=dilation)
    assert jnp.allclose(out, ref_f32, atol=1e-1, rtol=1e-1), \
        "mismatch vs f32 reference"

    print("KERNEL_OK")
</pallas_src>

<mosaic_0001>
module attributes {stable_mosaic.version = 11 : i64} {
  func.func @_aspp_kernel(%arg0: i32, %arg1: i32, %arg2: memref<1x20x24x16xf32, #tpu.memory_space<vmem>>, %arg3: memref<9x16x128xbf16, #tpu.memory_space<vmem>>, %arg4: memref<1x128xf32, #tpu.memory_space<vmem>>, %arg5: memref<1x128xf32, #tpu.memory_space<vmem>>, %arg6: memref<1x16x16x128xf32, #tpu.memory_space<vmem>>) attributes {dimension_semantics = [#tpu.dimension_semantics<parallel>, #tpu.dimension_semantics<parallel>], iteration_bounds = array<i64: 2, 1>, scalar_prefetch = 0 : i64, scratch_operands = 0 : i64, tpu.core_type = #tpu.core_type<tc>, window_params = [{transform_indices = @transform_0, window_bounds = array<i64: 1, 20, 24, 16>}, {transform_indices = @transform_1, window_bounds = array<i64: 9, 16, 128>}, {transform_indices = @transform_2, window_bounds = array<i64: 1, 128>}, {transform_indices = @transform_3, window_bounds = array<i64: 1, 128>}, {transform_indices = @transform_4, window_bounds = array<i64: 1, 16, 16, 128>}]} {
    %c0 = arith.constant 0 : index
    %c0_0 = arith.constant 0 : index
    %0 = vector.load %arg4[%c0, %c0_0] : memref<1x128xf32, #tpu.memory_space<vmem>>, vector<1x128xf32>
    %c0_1 = arith.constant 0 : index
    %c0_2 = arith.constant 0 : index
    %1 = vector.load %arg5[%c0_1, %c0_2] : memref<1x128xf32, #tpu.memory_space<vmem>>, vector<1x128xf32>
    %c0_i32 = arith.constant 0 : i32
    %c2_i32 = arith.constant 2 : i32
    %2 = arith.addi %c0_i32, %c2_i32 : i32
    %c1_i32 = arith.constant 1 : i32
    scf.for %arg7 = %c0_i32 to %2 step %c1_i32  : i32 {
      %c1_i32_4 = arith.constant 1 : i32
      %3 = arith.muli %arg7, %c1_i32_4 : i32
      %c0_i32_5 = arith.constant 0 : i32
      %4 = arith.addi %c0_i32_5, %3 : i32
      %c8_i32 = arith.constant 8 : i32
      %5 = arith.muli %4, %c8_i32 : i32
      %6 = tpu.assume_multiple %5, 8 : i32
      %cst = arith.constant 0.000000e+00 : f32
      %7 = vector.broadcast %cst : f32 to vector<128x128xf32>
      %c0_i32_6 = arith.constant 0 : i32
      %8 = arith.addi %6, %c0_i32_6 : i32
      %c0_7 = arith.constant 0 : index
      %9 = arith.index_cast %8 : i32 to index
      %c0_8 = arith.constant 0 : index
      %c0_9 = arith.constant 0 : index
      %10 = vector.load %arg2[%c0_7, %9, %c0_8, %c0_9] : memref<1x20x24x16xf32, #tpu.memory_space<vmem>>, vector<1x8x24x16xf32>
      %11 = vector.shape_cast %10 : vector<1x8x24x16xf32> to vector<8x24x16xf32>
      %12 = vector.extract_strided_slice %11 {offsets = [0, 0, 0], sizes = [8, 16, 16], strides = [1, 1, 1]} : vector<8x24x16xf32> to vector<8x16x16xf32>
      %13 = vector.shape_cast %12 : vector<8x16x16xf32> to vector<128x16xf32>
      %14 = arith.truncf %13 : vector<128x16xf32> to vector<128x16xbf16>
      %c0_10 = arith.constant 0 : index
      %c0_11 = arith.constant 0 : index
      %c0_12 = arith.constant 0 : index
      %15 = vector.load %arg3[%c0_10, %c0_11, %c0_12] : memref<9x16x128xbf16, #tpu.memory_space<vmem>>, vector<1x16x128xbf16>
      %16 = vector.shape_cast %15 : vector<1x16x128xbf16> to vector<16x128xbf16>
      %cst_13 = arith.constant dense<0.000000e+00> : vector<128x128xf32>
      %17 = tpu.matmul %14, %16, %cst_13 {dimension_numbers = #tpu.dot_dimension_numbers<[1], [0], [0], [1], [0, 0, 1, 1], [], []>} : vector<128x16xbf16>, vector<16x128xbf16>, vector<128x128xf32> -> vector<128x128xf32>
      %18 = arith.addf %7, %17 : vector<128x128xf32>
      %c22_i32 = arith.constant 22 : i32
      %19 = tpu.dynamic_rotate %11 by %c22_i32 dim 1 : vector<8x24x16xf32>, i32 -> vector<8x24x16xf32>
      %20 = vector.extract_strided_slice %19 {offsets = [0, 0, 0], sizes = [8, 16, 16], strides = [1, 1, 1]} : vector<8x24x16xf32> to vector<8x16x16xf32>
      %21 = vector.shape_cast %20 : vector<8x16x16xf32> to vector<128x16xf32>
      %22 = arith.truncf %21 : vector<128x16xf32> to vector<128x16xbf16>
      %c1 = arith.constant 1 : index
      %c0_14 = arith.constant 0 : index
      %c0_15 = arith.constant 0 : index
      %23 = vector.load %arg3[%c1, %c0_14, %c0_15] : memref<9x16x128xbf16, #tpu.memory_space<vmem>>, vector<1x16x128xbf16>
      %24 = vector.shape_cast %23 : vector<1x16x128xbf16> to vector<16x128xbf16>
      %cst_16 = arith.constant dense<0.000000e+00> : vector<128x128xf32>
      %25 = tpu.matmul %22, %24, %cst_16 {dimension_numbers = #tpu.dot_dimension_numbers<[1], [0], [0], [1], [0, 0, 1, 1], [], []>} : vector<128x16xbf16>, vector<16x128xbf16>, vector<128x128xf32> -> vector<128x128xf32>
      %26 = arith.addf %18, %25 : vector<128x128xf32>
      %c20_i32 = arith.constant 20 : i32
      %27 = tpu.dynamic_rotate %11 by %c20_i32 dim 1 : vector<8x24x16xf32>, i32 -> vector<8x24x16xf32>
      %28 = vector.extract_strided_slice %27 {offsets = [0, 0, 0], sizes = [8, 16, 16], strides = [1, 1, 1]} : vector<8x24x16xf32> to vector<8x16x16xf32>
      %29 = vector.shape_cast %28 : vector<8x16x16xf32> to vector<128x16xf32>
      %30 = arith.truncf %29 : vector<128x16xf32> to vector<128x16xbf16>
      %c2 = arith.constant 2 : index
      %c0_17 = arith.constant 0 : index
      %c0_18 = arith.constant 0 : index
      %31 = vector.load %arg3[%c2, %c0_17, %c0_18] : memref<9x16x128xbf16, #tpu.memory_space<vmem>>, vector<1x16x128xbf16>
      %32 = vector.shape_cast %31 : vector<1x16x128xbf16> to vector<16x128xbf16>
      %cst_19 = arith.constant dense<0.000000e+00> : vector<128x128xf32>
      %33 = tpu.matmul %30, %32, %cst_19 {dimension_numbers = #tpu.dot_dimension_numbers<[1], [0], [0], [1], [0, 0, 1, 1], [], []>} : vector<128x16xbf16>, vector<16x128xbf16>, vector<128x128xf32> -> vector<128x128xf32>
      %34 = arith.addf %26, %33 : vector<128x128xf32>
      %c2_i32_20 = arith.constant 2 : i32
      %35 = arith.addi %6, %c2_i32_20 : i32
      %c0_21 = arith.constant 0 : index
      %36 = arith.index_cast %35 : i32 to index
      %c0_22 = arith.constant 0 : index
      %c0_23 = arith.constant 0 : index
      %37 = vector.load %arg2[%c0_21, %36, %c0_22, %c0_23] : memref<1x20x24x16xf32, #tpu.memory_space<vmem>>, vector<1x8x24x16xf32>
      %38 = vector.shape_cast %37 : vector<1x8x24x16xf32> to vector<8x24x16xf32>
      %39 = vector.extract_strided_slice %38 {offsets = [0, 0, 0], sizes = [8, 16, 16], strides = [1, 1, 1]} : vector<8x24x16xf32> to vector<8x16x16xf32>
      %40 = vector.shape_cast %39 : vector<8x16x16xf32> to vector<128x16xf32>
      %41 = arith.truncf %40 : vector<128x16xf32> to vector<128x16xbf16>
      %c3 = arith.constant 3 : index
      %c0_24 = arith.constant 0 : index
      %c0_25 = arith.constant 0 : index
      %42 = vector.load %arg3[%c3, %c0_24, %c0_25] : memref<9x16x128xbf16, #tpu.memory_space<vmem>>, vector<1x16x128xbf16>
      %43 = vector.shape_cast %42 : vector<1x16x128xbf16> to vector<16x128xbf16>
      %cst_26 = arith.constant dense<0.000000e+00> : vector<128x128xf32>
      %44 = tpu.matmul %41, %43, %cst_26 {dimension_numbers = #tpu.dot_dimension_numbers<[1], [0], [0], [1], [0, 0, 1, 1], [], []>} : vector<128x16xbf16>, vector<16x128xbf16>, vector<128x128xf32> -> vector<128x128xf32>
      %45 = arith.addf %34, %44 : vector<128x128xf32>
      %c22_i32_27 = arith.constant 22 : i32
      %46 = tpu.dynamic_rotate %38 by %c22_i32_27 dim 1 : vector<8x24x16xf32>, i32 -> vector<8x24x16xf32>
      %47 = vector.extract_strided_slice %46 {offsets = [0, 0, 0], sizes = [8, 16, 16], strides = [1, 1, 1]} : vector<8x24x16xf32> to vector<8x16x16xf32>
      %48 = vector.shape_cast %47 : vector<8x16x16xf32> to vector<128x16xf32>
      %49 = arith.truncf %48 : vector<128x16xf32> to vector<128x16xbf16>
      %c4 = arith.constant 4 : index
      %c0_28 = arith.constant 0 : index
      %c0_29 = arith.constant 0 : index
      %50 = vector.load %arg3[%c4, %c0_28, %c0_29] : memref<9x16x128xbf16, #tpu.memory_space<vmem>>, vector<1x16x128xbf16>
      %51 = vector.shape_cast %50 : vector<1x16x128xbf16> to vector<16x128xbf16>
      %cst_30 = arith.constant dense<0.000000e+00> : vector<128x128xf32>
      %52 = tpu.matmul %49, %51, %cst_30 {dimension_numbers = #tpu.dot_dimension_numbers<[1], [0], [0], [1], [0, 0, 1, 1], [], []>} : vector<128x16xbf16>, vector<16x128xbf16>, vector<128x128xf32> -> vector<128x128xf32>
      %53 = arith.addf %45, %52 : vector<128x128xf32>
      %c20_i32_31 = arith.constant 20 : i32
      %54 = tpu.dynamic_rotate %38 by %c20_i32_31 dim 1 : vector<8x24x16xf32>, i32 -> vector<8x24x16xf32>
      %55 = vector.extract_strided_slice %54 {offsets = [0, 0, 0], sizes = [8, 16, 16], strides = [1, 1, 1]} : vector<8x24x16xf32> to vector<8x16x16xf32>
      %56 = vector.shape_cast %55 : vector<8x16x16xf32> to vector<128x16xf32>
      %57 = arith.truncf %56 : vector<128x16xf32> to vector<128x16xbf16>
      %c5 = arith.constant 5 : index
      %c0_32 = arith.constant 0 : index
      %c0_33 = arith.constant 0 : index
      %58 = vector.load %arg3[%c5, %c0_32, %c0_33] : memref<9x16x128xbf16, #tpu.memory_space<vmem>>, vector<1x16x128xbf16>
      %59 = vector.shape_cast %58 : vector<1x16x128xbf16> to vector<16x128xbf16>
      %cst_34 = arith.constant dense<0.000000e+00> : vector<128x128xf32>
      %60 = tpu.matmul %57, %59, %cst_34 {dimension_numbers = #tpu.dot_dimension_numbers<[1], [0], [0], [1], [0, 0, 1, 1], [], []>} : vector<128x16xbf16>, vector<16x128xbf16>, vector<128x128xf32> -> vector<128x128xf32>
      %61 = arith.addf %53, %60 : vector<128x128xf32>
      %c4_i32 = arith.constant 4 : i32
      %62 = arith.addi %6, %c4_i32 : i32
      %c0_35 = arith.constant 0 : index
      %63 = arith.index_cast %62 : i32 to index
      %c0_36 = arith.constant 0 : index
      %c0_37 = arith.constant 0 : index
      %64 = vector.load %arg2[%c0_35, %63, %c0_36, %c0_37] : memref<1x20x24x16xf32, #tpu.memory_space<vmem>>, vector<1x8x24x16xf32>
      %65 = vector.shape_cast %64 : vector<1x8x24x16xf32> to vector<8x24x16xf32>
      %66 = vector.extract_strided_slice %65 {offsets = [0, 0, 0], sizes = [8, 16, 16], strides = [1, 1, 1]} : vector<8x24x16xf32> to vector<8x16x16xf32>
      %67 = vector.shape_cast %66 : vector<8x16x16xf32> to vector<128x16xf32>
      %68 = arith.truncf %67 : vector<128x16xf32> to vector<128x16xbf16>
      %c6 = arith.constant 6 : index
      %c0_38 = arith.constant 0 : index
      %c0_39 = arith.constant 0 : index
      %69 = vector.load %arg3[%c6, %c0_38, %c0_39] : memref<9x16x128xbf16, #tpu.memory_space<vmem>>, vector<1x16x128xbf16>
      %70 = vector.shape_cast %69 : vector<1x16x128xbf16> to vector<16x128xbf16>
      %cst_40 = arith.constant dense<0.000000e+00> : vector<128x128xf32>
      %71 = tpu.matmul %68, %70, %cst_40 {dimension_numbers = #tpu.dot_dimension_numbers<[1], [0], [0], [1], [0, 0, 1, 1], [], []>} : vector<128x16xbf16>, vector<16x128xbf16>, vector<128x128xf32> -> vector<128x128xf32>
      %72 = arith.addf %61, %71 : vector<128x128xf32>
      %c22_i32_41 = arith.constant 22 : i32
      %73 = tpu.dynamic_rotate %65 by %c22_i32_41 dim 1 : vector<8x24x16xf32>, i32 -> vector<8x24x16xf32>
      %74 = vector.extract_strided_slice %73 {offsets = [0, 0, 0], sizes = [8, 16, 16], strides = [1, 1, 1]} : vector<8x24x16xf32> to vector<8x16x16xf32>
      %75 = vector.shape_cast %74 : vector<8x16x16xf32> to vector<128x16xf32>
      %76 = arith.truncf %75 : vector<128x16xf32> to vector<128x16xbf16>
      %c7 = arith.constant 7 : index
      %c0_42 = arith.constant 0 : index
      %c0_43 = arith.constant 0 : index
      %77 = vector.load %arg3[%c7, %c0_42, %c0_43] : memref<9x16x128xbf16, #tpu.memory_space<vmem>>, vector<1x16x128xbf16>
      %78 = vector.shape_cast %77 : vector<1x16x128xbf16> to vector<16x128xbf16>
      %cst_44 = arith.constant dense<0.000000e+00> : vector<128x128xf32>
      %79 = tpu.matmul %76, %78, %cst_44 {dimension_numbers = #tpu.dot_dimension_numbers<[1], [0], [0], [1], [0, 0, 1, 1], [], []>} : vector<128x16xbf16>, vector<16x128xbf16>, vector<128x128xf32> -> vector<128x128xf32>
      %80 = arith.addf %72, %79 : vector<128x128xf32>
      %c20_i32_45 = arith.constant 20 : i32
      %81 = tpu.dynamic_rotate %65 by %c20_i32_45 dim 1 : vector<8x24x16xf32>, i32 -> vector<8x24x16xf32>
      %82 = vector.extract_strided_slice %81 {offsets = [0, 0, 0], sizes = [8, 16, 16], strides = [1, 1, 1]} : vector<8x24x16xf32> to vector<8x16x16xf32>
      %83 = vector.shape_cast %82 : vector<8x16x16xf32> to vector<128x16xf32>
      %84 = arith.truncf %83 : vector<128x16xf32> to vector<128x16xbf16>
      %c8 = arith.constant 8 : index
      %c0_46 = arith.constant 0 : index
      %c0_47 = arith.constant 0 : index
      %85 = vector.load %arg3[%c8, %c0_46, %c0_47] : memref<9x16x128xbf16, #tpu.memory_space<vmem>>, vector<1x16x128xbf16>
      %86 = vector.shape_cast %85 : vector<1x16x128xbf16> to vector<16x128xbf16>
      %cst_48 = arith.constant dense<0.000000e+00> : vector<128x128xf32>
      %87 = tpu.matmul %84, %86, %cst_48 {dimension_numbers = #tpu.dot_dimension_numbers<[1], [0], [0], [1], [0, 0, 1, 1], [], []>} : vector<128x16xbf16>, vector<16x128xbf16>, vector<128x128xf32> -> vector<128x128xf32>
      %88 = arith.addf %80, %87 : vector<128x128xf32>
      %89 = vector.broadcast %0 : vector<1x128xf32> to vector<128x128xf32>
      %90 = arith.mulf %88, %89 : vector<128x128xf32>
      %91 = vector.broadcast %1 : vector<1x128xf32> to vector<128x128xf32>
      %92 = arith.addf %90, %91 : vector<128x128xf32>
      %cst_49 = arith.constant 0.000000e+00 : f32
      %93 = vector.broadcast %cst_49 : f32 to vector<128x128xf32>
      %94 = arith.maximumf %92, %93 : vector<128x128xf32>
      %95 = vector.shape_cast %94 : vector<128x128xf32> to vector<8x16x128xf32>
      %c0_50 = arith.constant 0 : index
      %96 = arith.index_cast %6 : i32 to index
      %c0_51 = arith.constant 0 : index
      %c0_52 = arith.constant 0 : index
      %97 = vector.load %arg6[%c0_50, %96, %c0_51, %c0_52] : memref<1x16x16x128xf32, #tpu.memory_space<vmem>>, vector<1x8x16x128xf32>
      %98 = vector.shape_cast %97 : vector<1x8x16x128xf32> to vector<8x16x128xf32>
      %99 = vector.shape_cast %95 : vector<8x16x128xf32> to vector<1x8x16x128xf32>
      tpu.vector_store %arg6[%c0_50, %96, %c0_51, %c0_52], %99 {strides = array<i32>} : memref<1x16x16x128xf32, #tpu.memory_space<vmem>>, vector<1x8x16x128xf32>,
    }
    %c2_i32_3 = arith.constant 2 : i32
    return
  }
  func.func @transform_0(%arg0: i32, %arg1: i32) -> (i32, i32, i32, i32) {
    %c0_i32 = arith.constant 0 : i32
    %c0_i32_0 = arith.constant 0 : i32
    %c0_i32_1 = arith.constant 0 : i32
    %c0_i32_2 = arith.constant 0 : i32
    return %arg0, %c0_i32, %c0_i32_0, %c0_i32_1 : i32, i32, i32, i32
  }
  func.func @transform_1(%arg0: i32, %arg1: i32) -> (i32, i32, i32) {
    %c0_i32 = arith.constant 0 : i32
    %c0_i32_0 = arith.constant 0 : i32
    %c0_i32_1 = arith.constant 0 : i32
    return %c0_i32, %c0_i32_0, %arg1 : i32, i32, i32
  }
  func.func @transform_2(%arg0: i32, %arg1: i32) -> (i32, i32) {
    %c0_i32 = arith.constant 0 : i32
    %c0_i32_0 = arith.constant 0 : i32
    return %c0_i32, %arg1 : i32, i32
  }
  func.func @transform_3(%arg0: i32, %arg1: i32) -> (i32, i32) {
    %c0_i32 = arith.constant 0 : i32
    %c0_i32_0 = arith.constant 0 : i32
    return %c0_i32, %arg1 : i32, i32
  }
  func.func @transform_4(%arg0: i32, %arg1: i32) -> (i32, i32, i32, i32) {
    %c0_i32 = arith.constant 0 : i32
    %c0_i32_0 = arith.constant 0 : i32
    %c0_i32_1 = arith.constant 0 : i32
    return %arg0, %c0_i32, %c0_i32_0, %arg1 : i32, i32, i32, i32
  }
}

</mosaic_0001>

<llo_original>
// kernel: tpu_custom_call.1
$region0: #{tpu_custom_call.1}
  #allocation0 [shape = 'u32[]', space=smem, size = 0x4, offset = 0x4, fixed_abs, tag = 'smem constant byte address 0x4 - core index']
  #allocation1 [shape = 'u32[144,128]{1,0:T(1,128)}', space=vmem, size = 0x12000, scoped, tag = 'internal scratch']
  %s0 = inlined_call_operand.vmem [shape: f32[2,20,24,16], index: 0, kind: input, shape index: {}]
  %s1 = inlined_call_operand.vmem [shape: bf16[9,16,128], index: 1, kind: input, shape index: {}]
  %s2 = inlined_call_operand.vmem [shape: f32[1,128], index: 2, kind: input, shape index: {}]
  %s3 = inlined_call_operand.vmem [shape: f32[1,128], index: 3, kind: input, shape index: {}]
  %s4 = inlined_call_operand.hbm [shape: f32[2,16,16,128], index: 4, kind: output, shape index: {}]
  %s5 = sld [smem:[#allocation0]]
  $region56: #{tpu_custom_call.1} parent=0
    _
  %s7 = ssub.s32 1, %s5
  %s8 = scalar_select 0, %s7, %s5
  $region1: #{tpu_custom_call.1} parent=0
    #allocation2 [shape = 'u8[262144]{0}', space=vmem, size = 0x40000, scoped, tag = 'output window, operand 0']
    #allocation3 [shape = 's32[2]{0}', space=sflag, size = 0x8, scoped, tag = 'scoped memory for tpu_custom_call.1']
    %9 = vsyncpa [#allocation3], 0
    %s10 = scalar_lea.sflag [#allocation3], 1
    %11 = vsyncpa %s10, 0
    loop: start=0, step=1, limit=4
    $region2: #{tpu_custom_call.1} parent=1 // loop_pre_header
      _
    $region3: #{tpu_custom_call.1} parent=1 // loop_header
      %s13 = sphi 0, %s17
      %p14 = scmp.ge.s32.totalorder %s13, 4
      %s20 = sphi 0, %s32
      %s21 = sphi 0, %s28
      %s22 = sphi 0, %s20
      %s23 = sphi 0, %s21
      %s24 = sphi 0, %s22
      %s25 = sphi 0, %s23
      %s35 = sphi 0, %s37
      %s38 = sphi 0, %s35
      %s39 = sphi 0, %s38
      %s55 = sphi 0, %s39
      %s61 = sphi 0, %s63
      %s64 = sphi 0, %s61
      %s65 = sphi 0, %s64
      %s81 = sphi 0, %s65
      %s87 = sphi 0, %s89
      %s90 = sphi 0, %s87
      %s91 = sphi 0, %s90
      %s107 = sphi 0, %s91
      %s113 = sphi 0, %s115
      %s116 = sphi 0, %s113
      %s117 = sphi 0, %s116
      %s133 = sphi 0, %s117
      %s141 = sphi 0, %s143
      %s144 = sphi 0, %s141
      %s145 = sphi 0, %s144
      %s161 = sphi 0, %s145
    $region4: #{tpu_custom_call.1} parent=1 // loop_header_branch
      %16 = sbr.rel (%p14) target = $region8
    $region5: #{tpu_custom_call.1} parent=1 // loop_body
      %s18 = ssub.s32 %s13, 1
      %s19 = ssub.s32 %s13, 2
      %s26 = sadd.s32 1, %s21
      %p27 = scmp.ge.s32.totalorder %s26, 1
      %s28 = scalar_select %p27, 0, %s26
      %s29 = sadd.s32 1, %s20
      %s30 = scalar_select %p27, %s29, %s20
      %p31 = scmp.ge.s32.totalorder %s30, 2
      %s32 = scalar_select %p31, 0, %s30
      %s33 = ssub.s32 %s20, %s32
      %p34 = scmp.eq.s32.totalorder %s33, 0
      %s36 = sadd.s32 %s35, 1
      %s37 = scalar_select %p34, %s35, %s36
      %p40 = pneg %p34
      %p41 = scmp.eq.s32.totalorder %s13, 1
      %p42 = por %p40, %p41
      %p43 = scmp.ne.s32.totalorder %s35, %s38
      %p44 = scmp.eq.s32.totalorder %s13, 0
      %p45 = por %p43, %p44
      %p46 = scmp.ne.s32.totalorder %s35, %s38
      %p47 = scmp.eq.s32.totalorder %s18, 1
      %p48 = por %p46, %p47
      %p49 = scmp.ne.s32.totalorder %s38, %s39
      %p50 = scmp.eq.s32.totalorder %s18, 0
      %p51 = por %p49, %p50
      %p52 = scmp.ne.s32.totalorder %s38, %s39
      %p53 = scmp.eq.s32.totalorder %s19, 1
      %p54 = por %p52, %p53
      %p56 = scmp.ne.s32.totalorder %s39, %s55
      %p57 = scmp.eq.s32.totalorder %s19, 0
      %p58 = por %p56, %p57
      %s59 = ssub.s32 %s21, %s28
      %p60 = scmp.eq.s32.totalorder %s59, 0
      %s62 = sadd.s32 %s61, 1
      %s63 = scalar_select %p60, %s61, %s62
      %p66 = pneg %p60
      %p67 = scmp.eq.s32.totalorder %s13, 1
      %p68 = por %p66, %p67
      %p69 = scmp.ne.s32.totalorder %s61, %s64
      %p70 = scmp.eq.s32.totalorder %s13, 0
      %p71 = por %p69, %p70
      %p72 = scmp.ne.s32.totalorder %s61, %s64
      %p73 = scmp.eq.s32.totalorder %s18, 1
      %p74 = por %p72, %p73
      %p75 = scmp.ne.s32.totalorder %s64, %s65
      %p76 = scmp.eq.s32.totalorder %s18, 0
      %p77 = por %p75, %p76
      %p78 = scmp.ne.s32.totalorder %s64, %s65
      %p79 = scmp.eq.s32.totalorder %s19, 1
      %p80 = por %p78, %p79
      %p82 = scmp.ne.s32.totalorder %s65, %s81
      %p83 = scmp.eq.s32.totalorder %s19, 0
      %p84 = por %p82, %p83
      %s85 = ssub.s32 %s21, %s28
      %p86 = scmp.eq.s32.totalorder %s85, 0
      %s88 = sadd.s32 %s87, 1
      %s89 = scalar_select %p86, %s87, %s88
      %p92 = pneg %p86
      %p93 = scmp.eq.s32.totalorder %s13, 1
      %p94 = por %p92, %p93
      %p95 = scmp.ne.s32.totalorder %s87, %s90
      %p96 = scmp.eq.s32.totalorder %s13, 0
      %p97 = por %p95, %p96
      %p98 = scmp.ne.s32.totalorder %s87, %s90
      %p99 = scmp.eq.s32.totalorder %s18, 1
      %p100 = por %p98, %p99
      %p101 = scmp.ne.s32.totalorder %s90, %s91
      %p102 = scmp.eq.s32.totalorder %s18, 0
      %p103 = por %p101, %p102
      %p104 = scmp.ne.s32.totalorder %s90, %s91
      %p105 = scmp.eq.s32.totalorder %s19, 1
      %p106 = por %p104, %p105
      %p108 = scmp.ne.s32.totalorder %s91, %s107
      %p109 = scmp.eq.s32.totalorder %s19, 0
      %p110 = por %p108, %p109
      %s111 = ssub.s32 %s21, %s28
      %p112 = scmp.eq.s32.totalorder %s111, 0
      %s114 = sadd.s32 %s113, 1
      %s115 = scalar_select %p112, %s113, %s114
      %p118 = pneg %p112
      %p119 = scmp.eq.s32.totalorder %s13, 1
      %p120 = por %p118, %p119
      %p121 = scmp.ne.s32.totalorder %s113, %s116
      %p122 = scmp.eq.s32.totalorder %s13, 0
      %p123 = por %p121, %p122
      %p124 = scmp.ne.s32.totalorder %s113, %s116
      %p125 = scmp.eq.s32.totalorder %s18, 1
      %p126 = por %p124, %p125
      %p127 = scmp.ne.s32.totalorder %s116, %s117
      %p128 = scmp.eq.s32.totalorder %s18, 0
      %p129 = por %p127, %p128
      %p130 = scmp.ne.s32.totalorder %s116, %s117
      %p131 = scmp.eq.s32.totalorder %s19, 1
      %p132 = por %p130, %p131
      %p134 = scmp.ne.s32.totalorder %s117, %s133
      %p135 = scmp.eq.s32.totalorder %s19, 0
      %p136 = por %p134, %p135
      %s137 = ssub.s32 %s20, %s32
      %s138 = ssub.s32 %s21, %s28
      %s139 = sor.u32 %s137, %s138
      %p140 = scmp.eq.s32.totalorder %s139, 0
      %s142 = sadd.s32 %s141, 1
      %s143 = scalar_select %p140, %s141, %s142
      %p146 = pneg %p140
      %p147 = scmp.eq.s32.totalorder %s13, 1
      %p148 = por %p146, %p147
      %p149 = scmp.ne.s32.totalorder %s141, %s144
      %p150 = scmp.eq.s32.totalorder %s13, 0
      %p151 = por %p149, %p150
      %p152 = scmp.ne.s32.totalorder %s141, %s144
      %p153 = scmp.eq.s32.totalorder %s18, 1
      %p154 = por %p152, %p153
      %p155 = scmp.ne.s32.totalorder %s144, %s145
      %p156 = scmp.eq.s32.totalorder %s18, 0
      %p157 = por %p155, %p156
      %p158 = scmp.ne.s32.totalorder %s144, %s145
      %p159 = scmp.eq.s32.totalorder %s19, 1
      %p160 = por %p158, %p159
      %p162 = scmp.ne.s32.totalorder %s145, %s161
      %p163 = scmp.eq.s32.totalorder %s19, 0
      %p164 = por %p162, %p163
      %p165 = scmp.le.s32.totalorder 1, %s13
      %p166 = scmp.lt.s32.totalorder %s13, 3
      %p167 = pnand %p165, %p166
      %p168 = pneg %p167
      // Predicated region
      $region9: #{tpu_custom_call.1} parent=5 // pred_check
        _
      $region10: #{tpu_custom_call.1} parent=5 // pred_check_branch
        %170 = sbr.rel (%p167) target = $region12
      $region11: #{tpu_custom_call.1} parent=5 // pred_region
        %s171 = ssub.s32 %s13, 1
        // Predicated region
        $region13: #{tpu_custom_call.1} parent=11 // pred_check
          %p172 = pneg %p77
        $region14: #{tpu_custom_call.1} parent=11 // pred_check_branch
          %174 = sbr.rel (%p172) target = $region16
        $region15: #{tpu_custom_call.1} parent=11 // pred_region
          %p175 = scmp.lt.s32.totalorder %s23, 0
          %s176 = scalar_select %p175, %s23, 0
          %s177 = smul.addr %s176, 4
          %s178 = scalar_lea.vmem %s1, %s177
        $region16: #{tpu_custom_call.1} parent=11 // pred_fallthru
          _
        // Predicated region
        $region17: #{tpu_custom_call.1} parent=11 // pred_check
          %p179 = pneg %p103
        $region18: #{tpu_custom_call.1} parent=11 // pred_check_branch
          %181 = sbr.rel (%p179) target = $region20
        $region19: #{tpu_custom_call.1} parent=11 // pred_region
          %p182 = scmp.lt.s32.totalorder %s23, 0
          %s183 = scalar_select %p182, %s23, 0
          %s184 = scalar_lea.vmem %s2, %s183
        $region20: #{tpu_custom_call.1} parent=11 // pred_fallthru
          _
        // Predicated region
        $region21: #{tpu_custom_call.1} parent=11 // pred_check
          %p185 = pneg %p129
        $region22: #{tpu_custom_call.1} parent=11 // pred_check_branch
          %187 = sbr.rel (%p185) target = $region24
        $region23: #{tpu_custom_call.1} parent=11 // pred_region
          %p188 = scmp.lt.s32.totalorder %s23, 0
          %s189 = scalar_select %p188, %s23, 0
          %s190 = scalar_lea.vmem %s3, %s189
        $region24: #{tpu_custom_call.1} parent=11 // pred_fallthru
          _
      $region12: #{tpu_custom_call.1} parent=5 // pred_fallthru
        _
      %p191 = scmp.lt.s32.totalorder %s13, 2
      // Predicated region
      $region25: #{tpu_custom_call.1} parent=5 // pred_check
        %p192 = pneg %p191
      $region26: #{tpu_custom_call.1} parent=5 // pred_check_branch
        %194 = sbr.rel (%p192) target = $region28
      $region27: #{tpu_custom_call.1} parent=5 // pred_region
        // Predicated region
        $region29: #{tpu_custom_call.1} parent=27 // pred_check
          %p195 = pneg %p45
        $region30: #{tpu_custom_call.1} parent=27 // pred_check_branch
          %197 = sbr.rel (%p195) target = $region32
        $region31: #{tpu_custom_call.1} parent=27 // pred_region
          %p198 = scmp.lt.s32.totalorder %s20, 1
          %s199 = scalar_select %p198, %s20, 1
          %s200 = smul.addr %s199, 60
          %s201 = smul.addr %s200, 8
          %s202 = scalar_lea.vmem %s0, %s201
        $region32: #{tpu_custom_call.1} parent=27 // pred_fallthru
          _
      $region28: #{tpu_custom_call.1} parent=5 // pred_fallthru
        _
      %p203 = scmp.le.s32.totalorder 1, %s13
      %p204 = scmp.lt.s32.totalorder %s13, 3
      %p205 = pnand %p203, %p204
      %p206 = pneg %p205
      // Predicated region
      $region33: #{tpu_custom_call.1} parent=5 // pred_check
        _
      $region34: #{tpu_custom_call.1} parent=5 // pred_check_branch
        %208 = sbr.rel (%p205) target = $region36
      $region35: #{tpu_custom_call.1} parent=5 // pred_region
        %s209 = ssub.s32 %s13, 1
        %p210 = scmp.lt.s32.totalorder %s22, 1
        %s211 = scalar_select %p210, %s22, 1
        %s212 = smul.addr %s211, 60
        %s213 = smul.addr %s212, 8
        %s214 = scalar_lea.vmem %s0, %s213
        %p215 = pneg %p51
        %p216 = pneg %p48
        %p217 = scmp.lt.s32.totalorder %s23, 0
        %s218 = scalar_select %p217, %s23, 0
        %s219 = smul.addr %s218, 4
        %s220 = scalar_lea.vmem %s1, %s219
        %p221 = pneg %p77
        %p222 = pneg %p74
        %p223 = scmp.lt.s32.totalorder %s23, 0
        %s224 = scalar_select %p223, %s23, 0
        %s225 = scalar_lea.vmem %s2, %s224
        %p226 = pneg %p103
        %p227 = pneg %p100
        %p228 = scmp.lt.s32.totalorder %s23, 0
        %s229 = scalar_select %p228, %s23, 0
        %s230 = scalar_lea.vmem %s3, %s229
        %p231 = pneg %p129
        %p232 = pneg %p126
        %p233 = pneg %p157
        %p234 = pneg %p154
        %s235 = sand.u32 %s144, 1
        %s236 = scalar_lea.sflag [#allocation3], %s235
        %s237 = sand.u32 %s144, 1
        %s238 = smul.addr %s237, 256
        %s239 = scalar_lea.vmem [#allocation2], %s238
        %p240 = scmp.lt.s32.totalorder %s22, 1
        %s241 = scalar_select %p240, %s22, 1
        %s242 = smul.addr %s241, 60
        %s243 = smul.addr %s242, 8
        %s244 = scalar_lea.vmem %s0, %s243
        %p245 = scmp.lt.s32.totalorder %s23, 0
        %s246 = scalar_select %p245, %s23, 0
        %s247 = smul.addr %s246, 4
        %s248 = scalar_lea.vmem %s1, %s247
        %p249 = scmp.lt.s32.totalorder %s23, 0
        %s250 = scalar_select %p249, %s23, 0
        %s251 = scalar_lea.vmem %s2, %s250
        %p252 = scmp.lt.s32.totalorder %s23, 0
        %s253 = scalar_select %p252, %s23, 0
        %s254 = scalar_lea.vmem %s3, %s253
        %v256 = vld [vmem:[%s251] sm:$0x1]
        %v257 = vld [vmem:[%s254] sm:$0x1]
        loop: start=0, step=1, limit=2
        $region37: #{tpu_custom_call.1} parent=35 // loop_pre_header
          _
        $region38: #{tpu_custom_call.1} parent=35 // loop_header
          %s259 = sphi 0, %s263
          %p260 = scmp.ge.s32.totalorder %s259, 2
        $region39: #{tpu_custom_call.1} parent=35 // loop_header_branch
          %262 = sbr.rel (%p260) target = $region43
        $region40: #{tpu_custom_call.1} parent=35 // loop_body
          %s264 = smul.u32 %s259, 8
          %s265 = smul.u32 %s264, 24
          %s266 = scalar_lea.vmem %s244, %s265
          %v267 = vld [vmem:[%s266] sm:$0xff]
          %v268 = vld [vmem:[%s266 + $0x8] sm:$0xff]
          %v269 = vld [vmem:[%s266 + $0x10] sm:$0xff]
          %v270 = vld [vmem:[%s266 + $0x18] sm:$0xff]
          %v271 = vld [vmem:[%s266 + $0x20] sm:$0xff]
          %v272 = vld [vmem:[%s266 + $0x28] sm:$0xff]
          %v273 = vld [vmem:[%s266 + $0x30] sm:$0xff]
          %v274 = vld [vmem:[%s266 + $0x38] sm:$0xff]
          %v275 = vld [vmem:[%s266 + $0x40] sm:$0xff]
          %v276 = vld [vmem:[%s266 + $0x48] sm:$0xff]
          %v277 = vld [vmem:[%s266 + $0x50] sm:$0xff]
          %v278 = vld [vmem:[%s266 + $0x58] sm:$0xff]
          %v279 = vld [vmem:[%s266 + $0x60] sm:$0xff]
          %v280 = vld [vmem:[%s266 + $0x68] sm:$0xff]
          %v281 = vld [vmem:[%s266 + $0x70] sm:$0xff]
          %v282 = vld [vmem:[%s266 + $0x78] sm:$0xff]
          %v283 = vld [vmem:[%s266 + $0x80] sm:$0xff]
          %v284 = vld [vmem:[%s266 + $0x88] sm:$0xff]
          %v285 = vld [vmem:[%s266 + $0x90] sm:$0xff]
          %v286 = vld [vmem:[%s266 + $0x98] sm:$0xff]
          %v287 = vld [vmem:[%s266 + $0xa0] sm:$0xff]
          %v288 = vld [vmem:[%s266 + $0xa8] sm:$0xff]
          %v289 = vld [vmem:[%s266 + $0xb0] sm:$0xff]
          %v290 = vld [vmem:[%s266 + $0xb8] sm:$0xff]
          %v291 = vpack.c.bf16 %v268, %v267
          %v292 = vpack.c.bf16 %v271, %v270
          %v293 = vpack.c.bf16 %v274, %v273
          %v294 = vpack.c.bf16 %v277, %v276
          %v295 = vpack.c.bf16 %v280, %v279
          %v296 = vpack.c.bf16 %v283, %v282
          %v297 = vpack.c.bf16 %v286, %v285
          %v298 = vpack.c.bf16 %v289, %v288
          %v299 = vld [vmem:[%s248] sm:$0xf]
          %v300 = vld [vmem:[%s248 + $0x4] sm:$0xf]
          %v301 = vrot.slane %v267, 2
          %v302 = vrot.slane %v270, 2
          %v303 = vrot.slane %v273, 2
          %v304 = vrot.slane %v276, 2
          %v305 = vrot.slane %v279, 2
          %v306 = vrot.slane %v282, 2
          %v307 = vrot.slane %v285, 2
          %v308 = vrot.slane %v288, 2
          %v309 = vrot.slane %v268, 2
          %v310 = vrot.slane %v271, 2
          %v311 = vrot.slane %v274, 2
          %v312 = vrot.slane %v277, 2
          %v313 = vrot.slane %v280, 2
          %v314 = vrot.slane %v283, 2
          %v315 = vrot.slane %v286, 2
          %v316 = vrot.slane %v289, 2
          %v317 = vrot.slane %v269, 2
          %v318 = vrot.slane %v272, 2
          %v319 = vrot.slane %v275, 2
          %v320 = vrot.slane %v278, 2
          %v321 = vrot.slane %v281, 2
          %v322 = vrot.slane %v284, 2
          %v323 = vrot.slane %v287, 2
          %v324 = vrot.slane %v290, 2
          %v325 = vlaneseq
          %v326 = vshrl.u32 %v325, 7
          %vm327 = vcmp.lt.s32.totalorder %v326, 6
          %v328 = vsel %vm327, %v309, %v317
          %v329 = vsel %vm327, %v310, %v318
          %v330 = vsel %vm327, %v311, %v319
          %v331 = vsel %vm327, %v312, %v320
          %v332 = vsel %vm327, %v313, %v321
          %v333 = vsel %vm327, %v314, %v322
          %v334 = vsel %vm327, %v315, %v323
          %v335 = vsel %vm327, %v316, %v324
          %v336 = vsel %vm327, %v301, %v309
          %v337 = vsel %vm327, %v302, %v310
          %v338 = vsel %vm327, %v303, %v311
          %v339 = vsel %vm327, %v304, %v312
          %v340 = vsel %vm327, %v305, %v313
          %v341 = vsel %vm327, %v306, %v314
          %v342 = vsel %vm327, %v307, %v315
          %v343 = vsel %vm327, %v308, %v316
          %v344 = vpack.c.bf16 %v328, %v336
          %v345 = vpack.c.bf16 %v329, %v337
          %v346 = vpack.c.bf16 %v330, %v338
          %v347 = vpack.c.bf16 %v331, %v339
          %v348 = vpack.c.bf16 %v332, %v340
          %v349 = vpack.c.bf16 %v333, %v341
          %v350 = vpack.c.bf16 %v334, %v342
          %v351 = vpack.c.bf16 %v335, %v343
          %s352 = scalar_lea.vmem %s248, 8
          %v353 = vld [vmem:[%s352] sm:$0xf]
          %v354 = vld [vmem:[%s352 + $0x4] sm:$0xf]
          %v357 = vunpack.c.l.b16 %v353
          %v358 = vunpack.c.l.b16 %v354
          %v359 = vpack.c.b16 %v358, %v357
          %vm361 = vcmask 130048
          %v363 = vsel %vm361, %v344, 0
          %v366 = vsel %vm361, %v345, 0
          %v369 = vsel %vm361, %v346, 0
          %v372 = vsel %vm361, %v347, 0
          %v375 = vsel %vm361, %v348, 0
          %v378 = vsel %vm361, %v349, 0
          %v381 = vsel %vm361, %v350, 0
          %v384 = vsel %vm361, %v351, 0
          %386 = vmatprep.subr.bf16.mxu0 0
          %387 = vmatpush1.bf16.msra.mxu0 %v359
          %388 = vmatprep.subr.bf16.mxu0 0
          %389 = vmatpush1.bf16.msra.mxu0 0
          %390 = vmatprep.subr.bf16.mxu0 0
          %391 = vmatpush1.bf16.msra.mxu0 0
          %392 = vmatprep.subr.bf16.mxu0 0
          %393 = vmatpush1.bf16.msra.mxu0 0
          %394 = vmatprep.subr.bf16.mxu0 0
          %395 = vmatpush1.bf16.msra.mxu0 0
          %396 = vmatprep.subr.bf16.mxu0 0
          %397 = vmatpush1.bf16.msra.mxu0 0
          %398 = vmatprep.subr.bf16.mxu0 0
          %399 = vmatpush1.bf16.msra.mxu0 0
          %400 = vmatprep.subr.bf16.mxu0 0
          %401 = vmatpush1.bf16.msra.mxu0 0
          %402 = vmatprep.subr.bf16.mxu0 0
          %403 = vmatpush1.bf16.msra.mxu0 0
          %404 = vmatprep.subr.bf16.mxu0 0
          %405 = vmatpush1.bf16.msra.mxu0 0
          %406 = vmatprep.subr.bf16.mxu0 0
          %407 = vmatpush1.bf16.msra.mxu0 0
          %408 = vmatprep.subr.bf16.mxu0 0
          %409 = vmatpush1.bf16.msra.mxu0 0
          %410 = vmatprep.subr.bf16.mxu0 0
          %411 = vmatpush1.bf16.msra.mxu0 0
          %412 = vmatprep.subr.bf16.mxu0 0
          %413 = vmatpush1.bf16.msra.mxu0 0
          %414 = vmatprep.subr.bf16.mxu0 0
          %415 = vmatpush1.bf16.msra.mxu0 0
          %416 = vmatprep.subr.bf16.mxu0 0
          %417 = vmatpush1.bf16.msra.mxu0 0
          %418 = vmatprep.mubr.bf16.mxu0 0
          %419 = vmatmul.mubr.bf16.gmra.mrb[0].mxu0 %v363
          %v420 = vpop.f32.mrb[0].mxu0
          %v421 = vadd.f32 0.0, %v420
          %v422 = vpop.f32.mrb[0].mxu0
          %v423 = vpop.f32.mrb[0].mxu0
          %v424 = vadd.f32 0.0, %v423
          %v425 = vpop.f32.mrb[0].mxu0
          %426 = vmatprep.mubr.bf16.mxu0 0
          %427 = vmatmul.mubr.bf16.gmra.mrb[0].mxu0 %v366
          %v428 = vpop.f32.mrb[0].mxu0
          %v429 = vadd.f32 0.0, %v428
          %v430 = vpop.f32.mrb[0].mxu0
          %v431 = vpop.f32.mrb[0].mxu0
          %v432 = vadd.f32 0.0, %v431
          %v433 = vpop.f32.mrb[0].mxu0
          %434 = vmatprep.mubr.bf16.mxu0 0
          %435 = vmatmul.mubr.bf16.gmra.mrb[0].mxu0 %v369
          %v436 = vpop.f32.mrb[0].mxu0
          %v437 = vadd.f32 0.0, %v436
          %v438 = vpop.f32.mrb[0].mxu0
          %v439 = vpop.f32.mrb[0].mxu0
          %v440 = vadd.f32 0.0, %v439
          %v441 = vpop.f32.mrb[0].mxu0
          %442 = vmatprep.mubr.bf16.mxu0 0
          %443 = vmatmul.mubr.bf16.gmra.mrb[0].mxu0 %v372
          %v444 = vpop.f32.mrb[0].mxu0
          %v445 = vadd.f32 0.0, %v444
          %v446 = vpop.f32.mrb[0].mxu0
          %v447 = vpop.f32.mrb[0].mxu0
          %v448 = vadd.f32 0.0, %v447
          %v449 = vpop.f32.mrb[0].mxu0
          %450 = vmatprep.mubr.bf16.mxu0 0
          %451 = vmatmul.mubr.bf16.gmra.mrb[0].mxu0 %v375
          %v452 = vpop.f32.mrb[0].mxu0
          %v453 = vadd.f32 0.0, %v452
          %v454 = vpop.f32.mrb[0].mxu0
          %v455 = vpop.f32.mrb[0].mxu0
          %v456 = vadd.f32 0.0, %v455
          %v457 = vpop.f32.mrb[0].mxu0
          %458 = vmatprep.mubr.bf16.mxu0 0
          %459 = vmatmul.mubr.bf16.gmra.mrb[0].mxu0 %v378
          %v460 = vpop.f32.mrb[0].mxu0
          %v461 = vadd.f32 0.0, %v460
          %v462 = vpop.f32.mrb[0].mxu0
          %v463 = vpop.f32.mrb[0].mxu0
          %v464 = vadd.f32 0.0, %v463
          %v465 = vpop.f32.mrb[0].mxu0
          %466 = vmatprep.mubr.bf16.mxu0 0
          %467 = vmatmul.mubr.bf16.gmra.mrb[0].mxu0 %v381
          %v468 = vpop.f32.mrb[0].mxu0
          %v469 = vadd.f32 0.0, %v468
          %v470 = vpop.f32.mrb[0].mxu0
          %v471 = vpop.f32.mrb[0].mxu0
          %v472 = vadd.f32 0.0, %v471
          %v473 = vpop.f32.mrb[0].mxu0
          %474 = vmatprep.mubr.bf16.mxu0 0
          %475 = vmatmul.mubr.bf16.gmra.mrb[0].mxu0 %v384
          %v476 = vpop.f32.mrb[0].mxu0
          %v477 = vadd.f32 0.0, %v476
          %v478 = vpop.f32.mrb[0].mxu0
          %v479 = vpop.f32.mrb[0].mxu0
          %v480 = vadd.f32 0.0, %v479
          %v481 = vpop.f32.mrb[0].mxu0
          %482 = vdwg.mxu0
          %v485 = vunpack.c.l.b16 %v299
          %v486 = vunpack.c.l.b16 %v300
          %v487 = vpack.c.b16 %v486, %v485
          %v490 = vsel %vm361, %v291, 0
          %v493 = vsel %vm361, %v292, 0
          %v496 = vsel %vm361, %v293, 0
          %v499 = vsel %vm361, %v294, 0
          %v502 = vsel %vm361, %v295, 0
          %v505 = vsel %vm361, %v296, 0
          %v508 = vsel %vm361, %v297, 0
          %v511 = vsel %vm361, %v298, 0
          %513 = vmatprep.subr.bf16.mxu0 0
          %514 = vmatpush1.bf16.msra.mxu0 %v487
          %515 = vmatprep.subr.bf16.mxu0 0
          %516 = vmatpush1.bf16.msra.mxu0 0
          %517 = vmatprep.subr.bf16.mxu0 0
          %518 = vmatpush1.bf16.msra.mxu0 0
          %519 = vmatprep.subr.bf16.mxu0 0
          %520 = vmatpush1.bf16.msra.mxu0 0
          %521 = vmatprep.subr.bf16.mxu0 0
          %522 = vmatpush1.bf16.msra.mxu0 0
          %523 = vmatprep.subr.bf16.mxu0 0
          %524 = vmatpush1.bf16.msra.mxu0 0
          %525 = vmatprep.subr.bf16.mxu0 0
          %526 = vmatpush1.bf16.msra.mxu0 0
          %527 = vmatprep.subr.bf16.mxu0 0
          %528 = vmatpush1.bf16.msra.mxu0 0
          %529 = vmatprep.subr.bf16.mxu0 0
          %530 = vmatpush1.bf16.msra.mxu0 0
          %531 = vmatprep.subr.bf16.mxu0 0
          %532 = vmatpush1.bf16.msra.mxu0 0
          %533 = vmatprep.subr.bf16.mxu0 0
          %534 = vmatpush1.bf16.msra.mxu0 0
          %535 = vmatprep.subr.bf16.mxu0 0
          %536 = vmatpush1.bf16.msra.mxu0 0
          %537 = vmatprep.subr.bf16.mxu0 0
          %538 = vmatpush1.bf16.msra.mxu0 0
          %539 = vmatprep.subr.bf16.mxu0 0
          %540 = vmatpush1.bf16.msra.mxu0 0
          %541 = vmatprep.subr.bf16.mxu0 0
          %542 = vmatpush1.bf16.msra.mxu0 0
          %543 = vmatprep.subr.bf16.mxu0 0
          %544 = vmatpush1.bf16.msra.mxu0 0
          %545 = vmatprep.mubr.bf16.mxu0 0
          %546 = vmatmul.mubr.bf16.gmra.mrb[0].mxu0 %v490
          %v547 = vpop.f32.mrb[0].mxu0
          %v548 = vadd.f32 %v421, %v547
          %v549 = vpop.f32.mrb[0].mxu0
          %v550 = vpop.f32.mrb[0].mxu0
          %v551 = vadd.f32 %v424, %v550
          %v552 = vpop.f32.mrb[0].mxu0
          %553 = vmatprep.mubr.bf16.mxu0 0
          %554 = vmatmul.mubr.bf16.gmra.mrb[0].mxu0 %v493
          %v555 = vpop.f32.mrb[0].mxu0
          %v556 = vadd.f32 %v429, %v555
          %v557 = vpop.f32.mrb[0].mxu0
          %v558 = vpop.f32.mrb[0].mxu0
          %v559 = vadd.f32 %v432, %v558
          %v560 = vpop.f32.mrb[0].mxu0
          %561 = vmatprep.mubr.bf16.mxu0 0
          %562 = vmatmul.mubr.bf16.gmra.mrb[0].mxu0 %v496
          %v563 = vpop.f32.mrb[0].mxu0
          %v564 = vadd.f32 %v437, %v563
          %v565 = vpop.f32.mrb[0].mxu0
          %v566 = vpop.f32.mrb[0].mxu0
          %v567 = vadd.f32 %v440, %v566
          %v568 = vpop.f32.mrb[0].mxu0
          %569 = vmatprep.mubr.bf16.mxu0 0
          %570 = vmatmul.mubr.bf16.gmra.mrb[0].mxu0 %v499
          %v571 = vpop.f32.mrb[0].mxu0
          %v572 = vadd.f32 %v445, %v571
          %v573 = vpop.f32.mrb[0].mxu0
          %v574 = vpop.f32.mrb[0].mxu0
          %v575 = vadd.f32 %v448, %v574
          %v576 = vpop.f32.mrb[0].mxu0
          %577 = vmatprep.mubr.bf16.mxu0 0
          %578 = vmatmul.mubr.bf16.gmra.mrb[0].mxu0 %v502
          %v579 = vpop.f32.mrb[0].mxu0
          %v580 = vadd.f32 %v453, %v579
          %v581 = vpop.f32.mrb[0].mxu0
          %v582 = vpop.f32.mrb[0].mxu0
          %v583 = vadd.f32 %v456, %v582
          %v584 = vpop.f32.mrb[0].mxu0
          %585 = vmatprep.mubr.bf16.mxu0 0
          %586 = vmatmul.mubr.bf16.gmra.mrb[0].mxu0 %v505
          %v587 = vpop.f32.mrb[0].mxu0
          %v588 = vadd.f32 %v461, %v587
          %v589 = vpop.f32.mrb[0].mxu0
          %v590 = vpop.f32.mrb[0].mxu0
          %v591 = vadd.f32 %v464, %v590
          %v592 = vpop.f32.mrb[0].mxu0
          %593 = vmatprep.mubr.bf16.mxu0 0
          %594 = vmatmul.mubr.bf16.gmra.mrb[0].mxu0 %v508
          %v595 = vpop.f32.mrb[0].mxu0
          %v596 = vadd.f32 %v469, %v595
          %v597 = vpop.f32.mrb[0].mxu0
          %v598 = vpop.f32.mrb[0].mxu0
          %v599 = vadd.f32 %v472, %v598
          %v600 = vpop.f32.mrb[0].mxu0
          %601 = vmatprep.mubr.bf16.mxu0 0
          %602 = vmatmul.mubr.bf16.gmra.mrb[0].mxu0 %v511
          %v603 = vpop.f32.mrb[0].mxu0
          %v604 = vadd.f32 %v477, %v603
          %v605 = vpop.f32.mrb[0].mxu0
          %v606 = vpop.f32.mrb[0].mxu0
          %v607 = vadd.f32 %v480, %v606
          %v608 = vpop.f32.mrb[0].mxu0
          %609 = vdwg.mxu0
          %v610 = vrot.slane %v267, 4
          %v611 = vrot.slane %v270, 4
          %v612 = vrot.slane %v273, 4
          %v613 = vrot.slane %v276, 4
          %v614 = vrot.slane %v279, 4
          %v615 = vrot.slane %v282, 4
          %v616 = vrot.slane %v285, 4
          %v617 = vrot.slane %v288, 4
          %v618 = vrot.slane %v268, 4
          %v619 = vrot.slane %v271, 4
          %v620 = vrot.slane %v274, 4
          %v621 = vrot.slane %v277, 4
          %v622 = vrot.slane %v280, 4
          %v623 = vrot.slane %v283, 4
          %v624 = vrot.slane %v286, 4
          %v625 = vrot.slane %v289, 4
          %v626 = vrot.slane %v269, 4
          %v627 = vrot.slane %v272, 4
          %v628 = vrot.slane %v275, 4
          %v629 = vrot.slane %v278, 4
          %v630 = vrot.slane %v281, 4
          %v631 = vrot.slane %v284, 4
          %v632 = vrot.slane %v287, 4
          %v633 = vrot.slane %v290, 4
          %vm634 = vcmp.lt.s32.totalorder %v326, 4
          %v635 = vsel %vm634, %v618, %v626
          %v636 = vsel %vm634, %v619, %v627
          %v637 = vsel %vm634, %v620, %v628
          %v638 = vsel %vm634, %v621, %v629
          %v639 = vsel %vm634, %v622, %v630
          %v640 = vsel %vm634, %v623, %v631
          %v641 = vsel %vm634, %v624, %v632
          %v642 = vsel %vm634, %v625, %v633
          %v643 = vsel %vm634, %v610, %v618
          %v644 = vsel %vm634, %v611, %v619
          %v645 = vsel %vm634, %v612, %v620
          %v646 = vsel %vm634, %v613, %v621
          %v647 = vsel %vm634, %v614, %v622
          %v648 = vsel %vm634, %v615, %v623
          %v649 = vsel %vm634, %v616, %v624
          %v650 = vsel %vm634, %v617, %v625
          %v651 = vpack.c.bf16 %v635, %v643
          %v652 = vpack.c.bf16 %v636, %v644
          %v653 = vpack.c.bf16 %v637, %v645
          %v654 = vpack.c.bf16 %v638, %v646
          %v655 = vpack.c.bf16 %v639, %v647
          %v656 = vpack.c.bf16 %v640, %v648
          %v657 = vpack.c.bf16 %v641, %v649
          %v658 = vpack.c.bf16 %v642, %v650
          %s659 = scalar_lea.vmem %s248, 16
          %v660 = vld [vmem:[%s659] sm:$0xf]
          %v661 = vld [vmem:[%s659 + $0x4] sm:$0xf]
          %v664 = vunpack.c.l.b16 %v660
          %v665 = vunpack.c.l.b16 %v661
          %v666 = vpack.c.b16 %v665, %v664
          %v669 = vsel %vm361, %v651, 0
          %v672 = vsel %vm361, %v652, 0
          %v675 = vsel %vm361, %v653, 0
          %v678 = vsel %vm361, %v654, 0
          %v681 = vsel %vm361, %v655, 0
          %v684 = vsel %vm361, %v656, 0
          %v687 = vsel %vm361, %v657, 0
          %v690 = vsel %vm361, %v658, 0
          %692 = vmatprep.subr.bf16.mxu0 0
          %693 = vmatpush1.bf16.msra.mxu0 %v666
          %694 = vmatprep.subr.bf16.mxu0 0
          %695 = vmatpush1.bf16.msra.mxu0 0
          %696 = vmatprep.subr.bf16.mxu0 0
          %697 = vmatpush1.bf16.msra.mxu0 0
          %698 = vmatprep.subr.bf16.mxu0 0
          %699 = vmatpush1.bf16.msra.mxu0 0
          %700 = vmatprep.subr.bf16.mxu0 0
          %701 = vmatpush1.bf16.msra.mxu0 0
          %702 = vmatprep.subr.bf16.mxu0 0
          %703 = vmatpush1.bf16.msra.mxu0 0
          %704 = vmatprep.subr.bf16.mxu0 0
          %705 = vmatpush1.bf16.msra.mxu0 0
          %706 = vmatprep.subr.bf16.mxu0 0
          %707 = vmatpush1.bf16.msra.mxu0 0
          %708 = vmatprep.subr.bf16.mxu0 0
          %709 = vmatpush1.bf16.msra.mxu0 0
          %710 = vmatprep.subr.bf16.mxu0 0
          %711 = vmatpush1.bf16.msra.mxu0 0
          %712 = vmatprep.subr.bf16.mxu0 0
          %713 = vmatpush1.bf16.msra.mxu0 0
          %714 = vmatprep.subr.bf16.mxu0 0
          %715 = vmatpush1.bf16.msra.mxu0 0
          %716 = vmatprep.subr.bf16.mxu0 0
          %717 = vmatpush1.bf16.msra.mxu0 0
          %718 = vmatprep.subr.bf16.mxu0 0
          %719 = vmatpush1.bf16.msra.mxu0 0
          %720 = vmatprep.subr.bf16.mxu0 0
          %721 = vmatpush1.bf16.msra.mxu0 0
          %722 = vmatprep.subr.bf16.mxu0 0
          %723 = vmatpush1.bf16.msra.mxu0 0
          %724 = vmatprep.mubr.bf16.mxu0 0
          %725 = vmatmul.mubr.bf16.gmra.mrb[0].mxu0 %v669
          %v726 = vpop.f32.mrb[0].mxu0
          %v727 = vadd.f32 0.0, %v726
          %v728 = vpop.f32.mrb[0].mxu0
          %v729 = vpop.f32.mrb[0].mxu0
          %v730 = vadd.f32 0.0, %v729
          %v731 = vpop.f32.mrb[0].mxu0
          %732 = vmatprep.mubr.bf16.mxu0 0
          %733 = vmatmul.mubr.bf16.gmra.mrb[0].mxu0 %v672
          %v734 = vpop.f32.mrb[0].mxu0
          %v735 = vadd.f32 0.0, %v734
          %v736 = vpop.f32.mrb[0].mxu0
          %v737 = vpop.f32.mrb[0].mxu0
          %v738 = vadd.f32 0.0, %v737
          %v739 = vpop.f32.mrb[0].mxu0
          %740 = vmatprep.mubr.bf16.mxu0 0
          %741 = vmatmul.mubr.bf16.gmra.mrb[0].mxu0 %v675
          %v742 = vpop.f32.mrb[0].mxu0
          %v743 = vadd.f32 0.0, %v742
          %v744 = vpop.f32.mrb[0].mxu0
          %v745 = vpop.f32.mrb[0].mxu0
          %v746 = vadd.f32 0.0, %v745
          %v747 = vpop.f32.mrb[0].mxu0
          %748 = vmatprep.mubr.bf16.mxu0 0
          %749 = vmatmul.mubr.bf16.gmra.mrb[0].mxu0 %v678
          %v750 = vpop.f32.mrb[0].mxu0
          %v751 = vadd.f32 0.0, %v750
          %v752 = vpop.f32.mrb[0].mxu0
          %v753 = vpop.f32.mrb[0].mxu0
          %v754 = vadd.f32 0.0, %v753
          %v755 = vpop.f32.mrb[0].mxu0
          %756 = vmatprep.mubr.bf16.mxu0 0
          %757 = vmatmul.mubr.bf16.gmra.mrb[0].mxu0 %v681
          %v758 = vpop.f32.mrb[0].mxu0
          %v759 = vadd.f32 0.0, %v758
          %v760 = vpop.f32.mrb[0].mxu0
          %v761 = vpop.f32.mrb[0].mxu0
          %v762 = vadd.f32 0.0, %v761
          %v763 = vpop.f32.mrb[0].mxu0
          %764 = vmatprep.mubr.bf16.mxu0 0
          %765 = vmatmul.mubr.bf16.gmra.mrb[0].mxu0 %v684
          %v766 = vpop.f32.mrb[0].mxu0
          %v767 = vadd.f32 0.0, %v766
          %v768 = vpop.f32.mrb[0].mxu0
          %v769 = vpop.f32.mrb[0].mxu0
          %v770 = vadd.f32 0.0, %v769
          %v771 = vpop.f32.mrb[0].mxu0
          %772 = vmatprep.mubr.bf16.mxu0 0
          %773 = vmatmul.mubr.bf16.gmra.mrb[0].mxu0 %v687
          %v774 = vpop.f32.mrb[0].mxu0
          %v775 = vadd.f32 0.0, %v774
          %v776 = vpop.f32.mrb[0].mxu0
          %v777 = vpop.f32.mrb[0].mxu0
          %v778 = vadd.f32 0.0, %v777
          %v779 = vpop.f32.mrb[0].mxu0
          %780 = vmatprep.mubr.bf16.mxu0 0
          %781 = vmatmul.mubr.bf16.gmra.mrb[0].mxu0 %v690
          %v782 = vpop.f32.mrb[0].mxu0
          %v783 = vadd.f32 0.0, %v782
          %v784 = vpop.f32.mrb[0].mxu0
          %v785 = vpop.f32.mrb[0].mxu0
          %v786 = vadd.f32 0.0, %v785
          %v787 = vpop.f32.mrb[0].mxu0
          %788 = vdwg.mxu0
          %v789 = vadd.f32 %v548, %v727
          %v790 = vadd.f32 %v551, %v730
          %v791 = vadd.f32 %v556, %v735
          %v792 = vadd.f32 %v559, %v738
          %v793 = vadd.f32 %v564, %v743
          %v794 = vadd.f32 %v567, %v746
          %v795 = vadd.f32 %v572, %v751
          %v796 = vadd.f32 %v575, %v754
          %v797 = vadd.f32 %v580, %v759
          %v798 = vadd.f32 %v583, %v762
          %v799 = vadd.f32 %v588, %v767
          %v800 = vadd.f32 %v591, %v770
          %v801 = vadd.f32 %v596, %v775
          %v802 = vadd.f32 %v599, %v778
          %v803 = vadd.f32 %v604, %v783
          %v804 = vadd.f32 %v607, %v786
          %s805 = sadd.s32 %s264, 2
          %s806 = smul.u32 %s805, 24
          %s807 = scalar_lea.vmem %s244, %s806
          %v808 = vld [vmem:[%s807] sm:$0xff]
          %v809 = vld [vmem:[%s807 + $0x8] sm:$0xff]
          %v810 = vld [vmem:[%s807 + $0x10] sm:$0xff]
          %v811 = vld [vmem:[%s807 + $0x18] sm:$0xff]
          %v812 = vld [vmem:[%s807 + $0x20] sm:$0xff]
          %v813 = vld [vmem:[%s807 + $0x28] sm:$0xff]
          %v814 = vld [vmem:[%s807 + $0x30] sm:$0xff]
          %v815 = vld [vmem:[%s807 + $0x38] sm:$0xff]
          %v816 = vld [vmem:[%s807 + $0x40] sm:$0xff]
          %v817 = vld [vmem:[%s807 + $0x48] sm:$0xff]
          %v818 = vld [vmem:[%s807 + $0x50] sm:$0xff]
          %v819 = vld [vmem:[%s807 + $0x58] sm:$0xff]
          %v820 = vld [vmem:[%s807 + $0x60] sm:$0xff]
          %v821 = vld [vmem:[%s807 + $0x68] sm:$0xff]
          %v822 = vld [vmem:[%s807 + $0x70] sm:$0xff]
          %v823 = vld [vmem:[%s807 + $0x78] sm:$0xff]
          %v824 = vld [vmem:[%s807 + $0x80] sm:$0xff]
          %v825 = vld [vmem:[%s807 + $0x88] sm:$0xff]
          %v826 = vld [vmem:[%s807 + $0x90] sm:$0xff]
          %v827 = vld [vmem:[%s807 + $0x98] sm:$0xff]
          %v828 = vld [vmem:[%s807 + $0xa0] sm:$0xff]
          %v829 = vld [vmem:[%s807 + $0xa8] sm:$0xff]
          %v830 = vld [vmem:[%s807 + $0xb0] sm:$0xff]
          %v831 = vld [vmem:[%s807 + $0xb8] sm:$0xff]
          %v832 = vpack.c.bf16 %v809, %v808
          %v833 = vpack.c.bf16 %v812, %v811
          %v834 = vpack.c.bf16 %v815, %v814
          %v835 = vpack.c.bf16 %v818, %v817
          %v836 = vpack.c.bf16 %v821, %v820
          %v837 = vpack.c.bf16 %v824, %v823
          %v838 = vpack.c.bf16 %v827, %v826
          %v839 = vpack.c.bf16 %v830, %v829
          %s840 = scalar_lea.vmem %s248, 24
          %v841 = vld [vmem:[%s840] sm:$0xf]
          %v842 = vld [vmem:[%s840 + $0x4] sm:$0xf]
          %v845 = vunpack.c.l.b16 %v841
          %v846 = vunpack.c.l.b16 %v842
          %v847 = vpack.c.b16 %v846, %v845
          %v850 = vsel %vm361, %v832, 0
          %v853 = vsel %vm361, %v833, 0
          %v856 = vsel %vm361, %v834, 0
          %v859 = vsel %vm361, %v835, 0
          %v862 = vsel %vm361, %v836, 0
          %v865 = vsel %vm361, %v837, 0
          %v868 = vsel %vm361, %v838, 0
          %v871 = vsel %vm361, %v839, 0
          %873 = vmatprep.subr.bf16.mxu0 0
          %874 = vmatpush1.bf16.msra.mxu0 %v847
          %875 = vmatprep.subr.bf16.mxu0 0
          %876 = vmatpush1.bf16.msra.mxu0 0
          %877 = vmatprep.subr.bf16.mxu0 0
          %878 = vmatpush1.bf16.msra.mxu0 0
          %879 = vmatprep.subr.bf16.mxu0 0
          %880 = vmatpush1.bf16.msra.mxu0 0
          %881 = vmatprep.subr.bf16.mxu0 0
          %882 = vmatpush1.bf16.msra.mxu0 0
          %883 = vmatprep.subr.bf16.mxu0 0
          %884 = vmatpush1.bf16.msra.mxu0 0
          %885 = vmatprep.subr.bf16.mxu0 0
          %886 = vmatpush1.bf16.msra.mxu0 0
          %887 = vmatprep.subr.bf16.mxu0 0
          %888 = vmatpush1.bf16.msra.mxu0 0
          %889 = vmatprep.subr.bf16.mxu0 0
          %890 = vmatpush1.bf16.msra.mxu0 0
          %891 = vmatprep.subr.bf16.mxu0 0
          %892 = vmatpush1.bf16.msra.mxu0 0
          %893 = vmatprep.subr.bf16.mxu0 0
          %894 = vmatpush1.bf16.msra.mxu0 0
          %895 = vmatprep.subr.bf16.mxu0 0
          %896 = vmatpush1.bf16.msra.mxu0 0
          %897 = vmatprep.subr.bf16.mxu0 0
          %898 = vmatpush1.bf16.msra.mxu0 0
          %899 = vmatprep.subr.bf16.mxu0 0
          %900 = vmatpush1.bf16.msra.mxu0 0
          %901 = vmatprep.subr.bf16.mxu0 0
          %902 = vmatpush1.bf16.msra.mxu0 0
          %903 = vmatprep.subr.bf16.mxu0 0
          %904 = vmatpush1.bf16.msra.mxu0 0
          %905 = vmatprep.mubr.bf16.mxu0 0
          %906 = vmatmul.mubr.bf16.gmra.mrb[0].mxu0 %v850
          %v907 = vpop.f32.mrb[0].mxu0
          %v908 = vadd.f32 0.0, %v907
          %v909 = vpop.f32.mrb[0].mxu0
          %v910 = vpop.f32.mrb[0].mxu0
          %v911 = vadd.f32 0.0, %v910
          %v912 = vpop.f32.mrb[0].mxu0
          %913 = vmatprep.mubr.bf16.mxu0 0
          %914 = vmatmul.mubr.bf16.gmra.mrb[0].mxu0 %v853
          %v915 = vpop.f32.mrb[0].mxu0
          %v916 = vadd.f32 0.0, %v915
          %v917 = vpop.f32.mrb[0].mxu0
          %v918 = vpop.f32.mrb[0].mxu0
          %v919 = vadd.f32 0.0, %v918
          %v920 = vpop.f32.mrb[0].mxu0
          %921 = vmatprep.mubr.bf16.mxu0 0
          %922 = vmatmul.mubr.bf16.gmra.mrb[0].mxu0 %v856
          %v923 = vpop.f32.mrb[0].mxu0
          %v924 = vadd.f32 0.0, %v923
          %v925 = vpop.f32.mrb[0].mxu0
          %v926 = vpop.f32.mrb[0].mxu0
          %v927 = vadd.f32 0.0, %v926
          %v928 = vpop.f32.mrb[0].mxu0
          %929 = vmatprep.mubr.bf16.mxu0 0
          %930 = vmatmul.mubr.bf16.gmra.mrb[0].mxu0 %v859
          %v931 = vpop.f32.mrb[0].mxu0
          %v932 = vadd.f32 0.0, %v931
          %v933 = vpop.f32.mrb[0].mxu0
          %v934 = vpop.f32.mrb[0].mxu0
          %v935 = vadd.f32 0.0, %v934
          %v936 = vpop.f32.mrb[0].mxu0
          %937 = vmatprep.mubr.bf16.mxu0 0
          %938 = vmatmul.mubr.bf16.gmra.mrb[0].mxu0 %v862
          %v939 = vpop.f32.mrb[0].mxu0
          %v940 = vadd.f32 0.0, %v939
          %v941 = vpop.f32.mrb[0].mxu0
          %v942 = vpop.f32.mrb[0].mxu0
          %v943 = vadd.f32 0.0, %v942
          %v944 = vpop.f32.mrb[0].mxu0
          %945 = vmatprep.mubr.bf16.mxu0 0
          %946 = vmatmul.mubr.bf16.gmra.mrb[0].mxu0 %v865
          %v947 = vpop.f32.mrb[0].mxu0
          %v948 = vadd.f32 0.0, %v947
          %v949 = vpop.f32.mrb[0].mxu0
          %v950 = vpop.f32.mrb[0].mxu0
          %v951 = vadd.f32 0.0, %v950
          %v952 = vpop.f32.mrb[0].mxu0
          %953 = vmatprep.mubr.bf16.mxu0 0
          %954 = vmatmul.mubr.bf16.gmra.mrb[0].mxu0 %v868
          %v955 = vpop.f32.mrb[0].mxu0
          %v956 = vadd.f32 0.0, %v955
          %v957 = vpop.f32.mrb[0].mxu0
          %v958 = vpop.f32.mrb[0].mxu0
          %v959 = vadd.f32 0.0, %v958
          %v960 = vpop.f32.mrb[0].mxu0
          %961 = vmatprep.mubr.bf16.mxu0 0
          %962 = vmatmul.mubr.bf16.gmra.mrb[0].mxu0 %v871
          %v963 = vpop.f32.mrb[0].mxu0
          %v964 = vadd.f32 0.0, %v963
          %v965 = vpop.f32.mrb[0].mxu0
          %v966 = vpop.f32.mrb[0].mxu0
          %v967 = vadd.f32 0.0, %v966
          %v968 = vpop.f32.mrb[0].mxu0
          %969 = vdwg.mxu0
          %v970 = vadd.f32 %v789, %v908
          %v971 = vadd.f32 %v790, %v911
          %v972 = vadd.f32 %v791, %v916
          %v973 = vadd.f32 %v792, %v919
          %v974 = vadd.f32 %v793, %v924
          %v975 = vadd.f32 %v794, %v927
          %v976 = vadd.f32 %v795, %v932
          %v977 = vadd.f32 %v796, %v935
          %v978 = vadd.f32 %v797, %v940
          %v979 = vadd.f32 %v798, %v943
          %v980 = vadd.f32 %v799, %v948
          %v981 = vadd.f32 %v800, %v951
          %v982 = vadd.f32 %v801, %v956
          %v983 = vadd.f32 %v802, %v959
          %v984 = vadd.f32 %v803, %v964
          %v985 = vadd.f32 %v804, %v967
          %v986 = vrot.slane %v808, 2
          %v987 = vrot.slane %v811, 2
          %v988 = vrot.slane %v814, 2
          %v989 = vrot.slane %v817, 2
          %v990 = vrot.slane %v820, 2
          %v991 = vrot.slane %v823, 2
          %v992 = vrot.slane %v826, 2
          %v993 = vrot.slane %v829, 2
          %v994 = vrot.slane %v809, 2
          %v995 = vrot.slane %v812, 2
          %v996 = vrot.slane %v815, 2
          %v997 = vrot.slane %v818, 2
          %v998 = vrot.slane %v821, 2
          %v999 = vrot.slane %v824, 2
          %v1000 = vrot.slane %v827, 2
          %v1001 = vrot.slane %v830, 2
          %v1002 = vrot.slane %v810, 2
          %v1003 = vrot.slane %v813, 2
          %v1004 = vrot.slane %v816, 2
          %v1005 = vrot.slane %v819, 2
          %v1006 = vrot.slane %v822, 2
          %v1007 = vrot.slane %v825, 2
          %v1008 = vrot.slane %v828, 2
          %v1009 = vrot.slane %v831, 2
          %v1010 = vsel %vm327, %v994, %v1002
          %v1011 = vsel %vm327, %v995, %v1003
          %v1012 = vsel %vm327, %v996, %v1004
          %v1013 = vsel %vm327, %v997, %v1005
          %v1014 = vsel %vm327, %v998, %v1006
          %v1015 = vsel %vm327, %v999, %v1007
          %v1016 = vsel %vm327, %v1000, %v1008
          %v1017 = vsel %vm327, %v1001, %v1009
          %v1018 = vsel %vm327, %v986, %v994
          %v1019 = vsel %vm327, %v987, %v995
          %v1020 = vsel %vm327, %v988, %v996
          %v1021 = vsel %vm327, %v989, %v997
          %v1022 = vsel %vm327, %v990, %v998
          %v1023 = vsel %vm327, %v991, %v999
          %v1024 = vsel %vm327, %v992, %v1000
          %v1025 = vsel %vm327, %v993, %v1001
          %v1026 = vpack.c.bf16 %v1010, %v1018
          %v1027 = vpack.c.bf16 %v1011, %v1019
          %v1028 = vpack.c.bf16 %v1012, %v1020
          %v1029 = vpack.c.bf16 %v1013, %v1021
          %v1030 = vpack.c.bf16 %v1014, %v1022
          %v1031 = vpack.c.bf16 %v1015, %v1023
          %v1032 = vpack.c.bf16 %v1016, %v1024
          %v1033 = vpack.c.bf16 %v1017, %v1025
          %s1034 = scalar_lea.vmem %s248, 32
          %v1035 = vld [vmem:[%s1034] sm:$0xf]
          %v1036 = vld [vmem:[%s1034 + $0x4] sm:$0xf]
          %v1039 = vunpack.c.l.b16 %v1035
          %v1040 = vunpack.c.l.b16 %v1036
          %v1041 = vpack.c.b16 %v1040, %v1039
          %v1044 = vsel %vm361, %v1026, 0
          %v1047 = vsel %vm361, %v1027, 0
          %v1050 = vsel %vm361, %v1028, 0
          %v1053 = vsel %vm361, %v1029, 0
          %v1056 = vsel %vm361, %v1030, 0
          %v1059 = vsel %vm361, %v1031, 0
          %v1062 = vsel %vm361, %v1032, 0
          %v1065 = vsel %vm361, %v1033, 0
          %1067 = vmatprep.subr.bf16.mxu0 0
          %1068 = vmatpush1.bf16.msra.mxu0 %v1041
          %1069 = vmatprep.subr.bf16.mxu0 0
          %1070 = vmatpush1.bf16.msra.mxu0 0
          %1071 = vmatprep.subr.bf16.mxu0 0
          %1072 = vmatpush1.bf16.msra.mxu0 0
          %1073 = vmatprep.subr.bf16.mxu0 0
          %1074 = vmatpush1.bf16.msra.mxu0 0
          %1075 = vmatprep.subr.bf16.mxu0 0
          %1076 = vmatpush1.bf16.msra.mxu0 0
          %1077 = vmatprep.subr.bf16.mxu0 0
          %1078 = vmatpush1.bf16.msra.mxu0 0
          %1079 = vmatprep.subr.bf16.mxu0 0
          %1080 = vmatpush1.bf16.msra.mxu0 0
          %1081 = vmatprep.subr.bf16.mxu0 0
          %1082 = vmatpush1.bf16.msra.mxu0 0
          %1083 = vmatprep.subr.bf16.mxu0 0
          %1084 = vmatpush1.bf16.msra.mxu0 0
          %1085 = vmatprep.subr.bf16.mxu0 0
          %1086 = vmatpush1.bf16.msra.mxu0 0
          %1087 = vmatprep.subr.bf16.mxu0 0
          %1088 = vmatpush1.bf16.msra.mxu0 0
          %1089 = vmatprep.subr.bf16.mxu0 0
          %1090 = vmatpush1.bf16.msra.mxu0 0
          %1091 = vmatprep.subr.bf16.mxu0 0
          %1092 = vmatpush1.bf16.msra.mxu0 0
          %1093 = vmatprep.subr.bf16.mxu0 0
          %1094 = vmatpush1.bf16.msra.mxu0 0
          %1095 = vmatprep.subr.bf16.mxu0 0
          %1096 = vmatpush1.bf16.msra.mxu0 0
          %1097 = vmatprep.subr.bf16.mxu0 0
          %1098 = vmatpush1.bf16.msra.mxu0 0
          %1099 = vmatprep.mubr.bf16.mxu0 0
          %1100 = vmatmul.mubr.bf16.gmra.mrb[0].mxu0 %v1044
          %v1101 = vpop.f32.mrb[0].mxu0
          %v1102 = vadd.f32 0.0, %v1101
          %v1103 = vpop.f32.mrb[0].mxu0
          %v1104 = vpop.f32.mrb[0].mxu0
          %v1105 = vadd.f32 0.0, %v1104
          %v1106 = vpop.f32.mrb[0].mxu0
          %1107 = vmatprep.mubr.bf16.mxu0 0
          %1108 = vmatmul.mubr.bf16.gmra.mrb[0].mxu0 %v1047
          %v1109 = vpop.f32.mrb[0].mxu0
          %v1110 = vadd.f32 0.0, %v1109
          %v1111 = vpop.f32.mrb[0].mxu0
          %v1112 = vpop.f32.mrb[0].mxu0
          %v1113 = vadd.f32 0.0, %v1112
          %v1114 = vpop.f32.mrb[0].mxu0
          %1115 = vmatprep.mubr.bf16.mxu0 0
          %1116 = vmatmul.mubr.bf16.gmra.mrb[0].mxu0 %v1050
          %v1117 = vpop.f32.mrb[0].mxu0
          %v1118 = vadd.f32 0.0, %v1117
          %v1119 = vpop.f32.mrb[0].mxu0
          %v1120 = vpop.f32.mrb[0].mxu0
          %v1121 = vadd.f32 0.0, %v1120
          %v1122 = vpop.f32.mrb[0].mxu0
          %1123 = vmatprep.mubr.bf16.mxu0 0
          %1124 = vmatmul.mubr.bf16.gmra.mrb[0].mxu0 %v1053
          %v1125 = vpop.f32.mrb[0].mxu0
          %v1126 = vadd.f32 0.0, %v1125
          %v1127 = vpop.f32.mrb[0].mxu0
          %v1128 = vpop.f32.mrb[0].mxu0
          %v1129 = vadd.f32 0.0, %v1128
          %v1130 = vpop.f32.mrb[0].mxu0
          %1131 = vmatprep.mubr.bf16.mxu0 0
          %1132 = vmatmul.mubr.bf16.gmra.mrb[0].mxu0 %v1056
          %v1133 = vpop.f32.mrb[0].mxu0
          %v1134 = vadd.f32 0.0, %v1133
          %v1135 = vpop.f32.mrb[0].mxu0
          %v1136 = vpop.f32.mrb[0].mxu0
          %v1137 = vadd.f32 0.0, %v1136
          %v1138 = vpop.f32.mrb[0].mxu0
          %1139 = vmatprep.mubr.bf16.mxu0 0
          %1140 = vmatmul.mubr.bf16.gmra.mrb[0].mxu0 %v1059
          %v1141 = vpop.f32.mrb[0].mxu0
          %v1142 = vadd.f32 0.0, %v1141
          %v1143 = vpop.f32.mrb[0].mxu0
          %v1144 = vpop.f32.mrb[0].mxu0
          %v1145 = vadd.f32 0.0, %v1144
          %v1146 = vpop.f32.mrb[0].mxu0
          %1147 = vmatprep.mubr.bf16.mxu0 0
          %1148 = vmatmul.mubr.bf16.gmra.mrb[0].mxu0 %v1062
          %v1149 = vpop.f32.mrb[0].mxu0
          %v1150 = vadd.f32 0.0, %v1149
          %v1151 = vpop.f32.mrb[0].mxu0
          %v1152 = vpop.f32.mrb[0].mxu0
          %v1153 = vadd.f32 0.0, %v1152
          %v1154 = vpop.f32.mrb[0].mxu0
          %1155 = vmatprep.mubr.bf16.mxu0 0
          %1156 = vmatmul.mubr.bf16.gmra.mrb[0].mxu0 %v1065
          %v1157 = vpop.f32.mrb[0].mxu0
          %v1158 = vadd.f32 0.0, %v1157
          %v1159 = vpop.f32.mrb[0].mxu0
          %v1160 = vpop.f32.mrb[0].mxu0
          %v1161 = vadd.f32 0.0, %v1160
          %v1162 = vpop.f32.mrb[0].mxu0
          %1163 = vdwg.mxu0
          %v1164 = vadd.f32 %v970, %v1102
          %v1165 = vadd.f32 %v971, %v1105
          %v1166 = vadd.f32 %v972, %v1110
          %v1167 = vadd.f32 %v973, %v1113
          %v1168 = vadd.f32 %v974, %v1118
          %v1169 = vadd.f32 %v975, %v1121
          %v1170 = vadd.f32 %v976, %v1126
          %v1171 = vadd.f32 %v977, %v1129
          %v1172 = vadd.f32 %v978, %v1134
          %v1173 = vadd.f32 %v979, %v1137
          %v1174 = vadd.f32 %v980, %v1142
          %v1175 = vadd.f32 %v981, %v1145
          %v1176 = vadd.f32 %v982, %v1150
          %v1177 = vadd.f32 %v983, %v1153
          %v1178 = vadd.f32 %v984, %v1158
          %v1179 = vadd.f32 %v985, %v1161
          %v1180 = vrot.slane %v808, 4
          %v1181 = vrot.slane %v811, 4
          %v1182 = vrot.slane %v814, 4
          %v1183 = vrot.slane %v817, 4
          %v1184 = vrot.slane %v820, 4
          %v1185 = vrot.slane %v823, 4
          %v1186 = vrot.slane %v826, 4
          %v1187 = vrot.slane %v829, 4
          %v1188 = vrot.slane %v809, 4
          %v1189 = vrot.slane %v812, 4
          %v1190 = vrot.slane %v815, 4
          %v1191 = vrot.slane %v818, 4
          %v1192 = vrot.slane %v821, 4
          %v1193 = vrot.slane %v824, 4
          %v1194 = vrot.slane %v827, 4
          %v1195 = vrot.slane %v830, 4
          %v1196 = vrot.slane %v810, 4
          %v1197 = vrot.slane %v813, 4
          %v1198 = vrot.slane %v816, 4
          %v1199 = vrot.slane %v819, 4
          %v1200 = vrot.slane %v822, 4
          %v1201 = vrot.slane %v825, 4
          %v1202 = vrot.slane %v828, 4
          %v1203 = vrot.slane %v831, 4
          %v1204 = vsel %vm634, %v1188, %v1196
          %v1205 = vsel %vm634, %v1189, %v1197
          %v1206 = vsel %vm634, %v1190, %v1198
          %v1207 = vsel %vm634, %v1191, %v1199
          %v1208 = vsel %vm634, %v1192, %v1200
          %v1209 = vsel %vm634, %v1193, %v1201
          %v1210 = vsel %vm634, %v1194, %v1202
          %v1211 = vsel %vm634, %v1195, %v1203
          %v1212 = vsel %vm634, %v1180, %v1188
          %v1213 = vsel %vm634, %v1181, %v1189
          %v1214 = vsel %vm634, %v1182, %v1190
          %v1215 = vsel %vm634, %v1183, %v1191
          %v1216 = vsel %vm634, %v1184, %v1192
          %v1217 = vsel %vm634, %v1185, %v1193
          %v1218 = vsel %vm634, %v1186, %v1194
          %v1219 = vsel %vm634, %v1187, %v1195
          %v1220 = vpack.c.bf16 %v1204, %v1212
          %v1221 = vpack.c.bf16 %v1205, %v1213
          %v1222 = vpack.c.bf16 %v1206, %v1214
          %v1223 = vpack.c.bf16 %v1207, %v1215
          %v1224 = vpack.c.bf16 %v1208, %v1216
          %v1225 = vpack.c.bf16 %v1209, %v1217
          %v1226 = vpack.c.bf16 %v1210, %v1218
          %v1227 = vpack.c.bf16 %v1211, %v1219
          %s1228 = scalar_lea.vmem %s248, 40
          %v1229 = vld [vmem:[%s1228] sm:$0xf]
          %v1230 = vld [vmem:[%s1228 + $0x4] sm:$0xf]
          %v1233 = vunpack.c.l.b16 %v1229
          %v1234 = vunpack.c.l.b16 %v1230
          %v1235 = vpack.c.b16 %v1234, %v1233
          %v1238 = vsel %vm361, %v1220, 0
          %v1241 = vsel %vm361, %v1221, 0
          %v1244 = vsel %vm361, %v1222, 0
          %v1247 = vsel %vm361, %v1223, 0
          %v1250 = vsel %vm361, %v1224, 0
          %v1253 = vsel %vm361, %v1225, 0
          %v1256 = vsel %vm361, %v1226, 0
          %v1259 = vsel %vm361, %v1227, 0
          %1261 = vmatprep.subr.bf16.mxu0 0
          %1262 = vmatpush1.bf16.msra.mxu0 %v1235
          %1263 = vmatprep.subr.bf16.mxu0 0
          %1264 = vmatpush1.bf16.msra.mxu0 0
          %1265 = vmatprep.subr.bf16.mxu0 0
          %1266 = vmatpush1.bf16.msra.mxu0 0
          %1267 = vmatprep.subr.bf16.mxu0 0
          %1268 = vmatpush1.bf16.msra.mxu0 0
          %1269 = vmatprep.subr.bf16.mxu0 0
          %1270 = vmatpush1.bf16.msra.mxu0 0
          %1271 = vmatprep.subr.bf16.mxu0 0
          %1272 = vmatpush1.bf16.msra.mxu0 0
          %1273 = vmatprep.subr.bf16.mxu0 0
          %1274 = vmatpush1.bf16.msra.mxu0 0
          %1275 = vmatprep.subr.bf16.mxu0 0
          %1276 = vmatpush1.bf16.msra.mxu0 0
          %1277 = vmatprep.subr.bf16.mxu0 0
          %1278 = vmatpush1.bf16.msra.mxu0 0
          %1279 = vmatprep.subr.bf16.mxu0 0
          %1280 = vmatpush1.bf16.msra.mxu0 0
          %1281 = vmatprep.subr.bf16.mxu0 0
          %1282 = vmatpush1.bf16.msra.mxu0 0
          %1283 = vmatprep.subr.bf16.mxu0 0
          %1284 = vmatpush1.bf16.msra.mxu0 0
          %1285 = vmatprep.subr.bf16.mxu0 0
          %1286 = vmatpush1.bf16.msra.mxu0 0
          %1287 = vmatprep.subr.bf16.mxu0 0
          %1288 = vmatpush1.bf16.msra.mxu0 0
          %1289 = vmatprep.subr.bf16.mxu0 0
          %1290 = vmatpush1.bf16.msra.mxu0 0
          %1291 = vmatprep.subr.bf16.mxu0 0
          %1292 = vmatpush1.bf16.msra.mxu0 0
          %1293 = vmatprep.mubr.bf16.mxu0 0
          %1294 = vmatmul.mubr.bf16.gmra.mrb[0].mxu0 %v1238
          %v1295 = vpop.f32.mrb[0].mxu0
          %v1296 = vadd.f32 0.0, %v1295
          %v1297 = vpop.f32.mrb[0].mxu0
          %v1298 = vpop.f32.mrb[0].mxu0
          %v1299 = vadd.f32 0.0, %v1298
          %v1300 = vpop.f32.mrb[0].mxu0
          %1301 = vmatprep.mubr.bf16.mxu0 0
          %1302 = vmatmul.mubr.bf16.gmra.mrb[0].mxu0 %v1241
          %v1303 = vpop.f32.mrb[0].mxu0
          %v1304 = vadd.f32 0.0, %v1303
          %v1305 = vpop.f32.mrb[0].mxu0
          %v1306 = vpop.f32.mrb[0].mxu0
          %v1307 = vadd.f32 0.0, %v1306
          %v1308 = vpop.f32.mrb[0].mxu0
          %1309 = vmatprep.mubr.bf16.mxu0 0
          %1310 = vmatmul.mubr.bf16.gmra.mrb[0].mxu0 %v1244
          %v1311 = vpop.f32.mrb[0].mxu0
          %v1312 = vadd.f32 0.0, %v1311
          %v1313 = vpop.f32.mrb[0].mxu0
          %v1314 = vpop.f32.mrb[0].mxu0
          %v1315 = vadd.f32 0.0, %v1314
          %v1316 = vpop.f32.mrb[0].mxu0
          %1317 = vmatprep.mubr.bf16.mxu0 0
          %1318 = vmatmul.mubr.bf16.gmra.mrb[0].mxu0 %v1247
          %v1319 = vpop.f32.mrb[0].mxu0
          %v1320 = vadd.f32 0.0, %v1319
          %v1321 = vpop.f32.mrb[0].mxu0
          %v1322 = vpop.f32.mrb[0].mxu0
          %v1323 = vadd.f32 0.0, %v1322
          %v1324 = vpop.f32.mrb[0].mxu0
          %1325 = vmatprep.mubr.bf16.mxu0 0
          %1326 = vmatmul.mubr.bf16.gmra.mrb[0].mxu0 %v1250
          %v1327 = vpop.f32.mrb[0].mxu0
          %v1328 = vadd.f32 0.0, %v1327
          %v1329 = vpop.f32.mrb[0].mxu0
          %v1330 = vpop.f32.mrb[0].mxu0
          %v1331 = vadd.f32 0.0, %v1330
          %v1332 = vpop.f32.mrb[0].mxu0
          %1333 = vmatprep.mubr.bf16.mxu0 0
          %1334 = vmatmul.mubr.bf16.gmra.mrb[0].mxu0 %v1253
          %v1335 = vpop.f32.mrb[0].mxu0
          %v1336 = vadd.f32 0.0, %v1335
          %v1337 = vpop.f32.mrb[0].mxu0
          %v1338 = vpop.f32.mrb[0].mxu0
          %v1339 = vadd.f32 0.0, %v1338
          %v1340 = vpop.f32.mrb[0].mxu0
          %1341 = vmatprep.mubr.bf16.mxu0 0
          %1342 = vmatmul.mubr.bf16.gmra.mrb[0].mxu0 %v1256
          %v1343 = vpop.f32.mrb[0].mxu0
          %v1344 = vadd.f32 0.0, %v1343
          %v1345 = vpop.f32.mrb[0].mxu0
          %v1346 = vpop.f32.mrb[0].mxu0
          %v1347 = vadd.f32 0.0, %v1346
          %v1348 = vpop.f32.mrb[0].mxu0
          %1349 = vmatprep.mubr.bf16.mxu0 0
          %1350 = vmatmul.mubr.bf16.gmra.mrb[0].mxu0 %v1259
          %v1351 = vpop.f32.mrb[0].mxu0
          %v1352 = vadd.f32 0.0, %v1351
          %v1353 = vpop.f32.mrb[0].mxu0
          %v1354 = vpop.f32.mrb[0].mxu0
          %v1355 = vadd.f32 0.0, %v1354
          %v1356 = vpop.f32.mrb[0].mxu0
          %1357 = vdwg.mxu0
          %v1358 = vadd.f32 %v1164, %v1296
          %v1359 = vadd.f32 %v1165, %v1299
          %v1360 = vadd.f32 %v1166, %v1304
          %v1361 = vadd.f32 %v1167, %v1307
          %v1362 = vadd.f32 %v1168, %v1312
          %v1363 = vadd.f32 %v1169, %v1315
          %v1364 = vadd.f32 %v1170, %v1320
          %v1365 = vadd.f32 %v1171, %v1323
          %v1366 = vadd.f32 %v1172, %v1328
          %v1367 = vadd.f32 %v1173, %v1331
          %v1368 = vadd.f32 %v1174, %v1336
          %v1369 = vadd.f32 %v1175, %v1339
          %v1370 = vadd.f32 %v1176, %v1344
          %v1371 = vadd.f32 %v1177, %v1347
          %v1372 = vadd.f32 %v1178, %v1352
          %v1373 = vadd.f32 %v1179, %v1355
          %s1374 = sadd.s32 %s264, 4
          %s1375 = smul.u32 %s1374, 24
          %s1376 = scalar_lea.vmem %s244, %s1375
          %v1377 = vld [vmem:[%s1376] sm:$0xff]
          %v1378 = vld [vmem:[%s1376 + $0x8] sm:$0xff]
          %v1379 = vld [vmem:[%s1376 + $0x10] sm:$0xff]
          %v1380 = vld [vmem:[%s1376 + $0x18] sm:$0xff]
          %v1381 = vld [vmem:[%s1376 + $0x20] sm:$0xff]
          %v1382 = vld [vmem:[%s1376 + $0x28] sm:$0xff]
          %v1383 = vld [vmem:[%s1376 + $0x30] sm:$0xff]
          %v1384 = vld [vmem:[%s1376 + $0x38] sm:$0xff]
          %v1385 = vld [vmem:[%s1376 + $0x40] sm:$0xff]
          %v1386 = vld [vmem:[%s1376 + $0x48] sm:$0xff]
          %v1387 = vld [vmem:[%s1376 + $0x50] sm:$0xff]
          %v1388 = vld [vmem:[%s1376 + $0x58] sm:$0xff]
          %v1389 = vld [vmem:[%s1376 + $0x60] sm:$0xff]
          %v1390 = vld [vmem:[%s1376 + $0x68] sm:$0xff]
          %v1391 = vld [vmem:[%s1376 + $0x70] sm:$0xff]
          %v1392 = vld [vmem:[%s1376 + $0x78] sm:$0xff]
          %v1393 = vld [vmem:[%s1376 + $0x80] sm:$0xff]
          %v1394 = vld [vmem:[%s1376 + $0x88] sm:$0xff]
          %v1395 = vld [vmem:[%s1376 + $0x90] sm:$0xff]
          %v1396 = vld [vmem:[%s1376 + $0x98] sm:$0xff]
          %v1397 = vld [vmem:[%s1376 + $0xa0] sm:$0xff]
          %v1398 = vld [vmem:[%s1376 + $0xa8] sm:$0xff]
          %v1399 = vld [vmem:[%s1376 + $0xb0] sm:$0xff]
          %v1400 = vld [vmem:[%s1376 + $0xb8] sm:$0xff]
          %v1401 = vpack.c.bf16 %v1378, %v1377
          %v1402 = vpack.c.bf16 %v1381, %v1380
          %v1403 = vpack.c.bf16 %v1384, %v1383
          %v1404 = vpack.c.bf16 %v1387, %v1386
          %v1405 = vpack.c.bf16 %v1390, %v1389
          %v1406 = vpack.c.bf16 %v1393, %v1392
          %v1407 = vpack.c.bf16 %v1396, %v1395
          %v1408 = vpack.c.bf16 %v1399, %v1398
          %s1409 = scalar_lea.vmem %s248, 48
          %v1410 = vld [vmem:[%s1409] sm:$0xf]
          %v1411 = vld [vmem:[%s1409 + $0x4] sm:$0xf]
          %v1414 = vunpack.c.l.b16 %v1410
          %v1415 = vunpack.c.l.b16 %v1411
          %v1416 = vpack.c.b16 %v1415, %v1414
          %v1419 = vsel %vm361, %v1401, 0
          %v1422 = vsel %vm361, %v1402, 0
          %v1425 = vsel %vm361, %v1403, 0
          %v1428 = vsel %vm361, %v1404, 0
          %v1431 = vsel %vm361, %v1405, 0
          %v1434 = vsel %vm361, %v1406, 0
          %v1437 = vsel %vm361, %v1407, 0
          %v1440 = vsel %vm361, %v1408, 0
          %1442 = vmatprep.subr.bf16.mxu0 0
          %1443 = vmatpush1.bf16.msra.mxu0 %v1416
          %1444 = vmatprep.subr.bf16.mxu0 0
          %1445 = vmatpush1.bf16.msra.mxu0 0
          %1446 = vmatprep.subr.bf16.mxu0 0
          %1447 = vmatpush1.bf16.msra.mxu0 0
          %1448 = vmatprep.subr.bf16.mxu0 0
          %1449 = vmatpush1.bf16.msra.mxu0 0
          %1450 = vmatprep.subr.bf16.mxu0 0
          %1451 = vmatpush1.bf16.msra.mxu0 0
          %1452 = vmatprep.subr.bf16.mxu0 0
          %1453 = vmatpush1.bf16.msra.mxu0 0
          %1454 = vmatprep.subr.bf16.mxu0 0
          %1455 = vmatpush1.bf16.msra.mxu0 0
          %1456 = vmatprep.subr.bf16.mxu0 0
          %1457 = vmatpush1.bf16.msra.mxu0 0
          %1458 = vmatprep.subr.bf16.mxu0 0
          %1459 = vmatpush1.bf16.msra.mxu0 0
          %1460 = vmatprep.subr.bf16.mxu0 0
          %1461 = vmatpush1.bf16.msra.mxu0 0
          %1462 = vmatprep.subr.bf16.mxu0 0
          %1463 = vmatpush1.bf16.msra.mxu0 0
          %1464 = vmatprep.subr.bf16.mxu0 0
          %1465 = vmatpush1.bf16.msra.mxu0 0
          %1466 = vmatprep.subr.bf16.mxu0 0
          %1467 = vmatpush1.bf16.msra.mxu0 0
          %1468 = vmatprep.subr.bf16.mxu0 0
          %1469 = vmatpush1.bf16.msra.mxu0 0
          %1470 = vmatprep.subr.bf16.mxu0 0
          %1471 = vmatpush1.bf16.msra.mxu0 0
          %1472 = vmatprep.subr.bf16.mxu0 0
          %1473 = vmatpush1.bf16.msra.mxu0 0
          %1474 = vmatprep.mubr.bf16.mxu0 0
          %1475 = vmatmul.mubr.bf16.gmra.mrb[0].mxu0 %v1419
          %v1476 = vpop.f32.mrb[0].mxu0
          %v1477 = vadd.f32 0.0, %v1476
          %v1478 = vpop.f32.mrb[0].mxu0
          %v1479 = vpop.f32.mrb[0].mxu0
          %v1480 = vadd.f32 0.0, %v1479
          %v1481 = vpop.f32.mrb[0].mxu0
          %1482 = vmatprep.mubr.bf16.mxu0 0
          %1483 = vmatmul.mubr.bf16.gmra.mrb[0].mxu0 %v1422
          %v1484 = vpop.f32.mrb[0].mxu0
          %v1485 = vadd.f32 0.0, %v1484
          %v1486 = vpop.f32.mrb[0].mxu0
          %v1487 = vpop.f32.mrb[0].mxu0
          %v1488 = vadd.f32 0.0, %v1487
          %v1489 = vpop.f32.mrb[0].mxu0
          %1490 = vmatprep.mubr.bf16.mxu0 0
          %1491 = vmatmul.mubr.bf16.gmra.mrb[0].mxu0 %v1425
          %v1492 = vpop.f32.mrb[0].mxu0
          %v1493 = vadd.f32 0.0, %v1492
          %v1494 = vpop.f32.mrb[0].mxu0
          %v1495 = vpop.f32.mrb[0].mxu0
          %v1496 = vadd.f32 0.0, %v1495
          %v1497 = vpop.f32.mrb[0].mxu0
          %1498 = vmatprep.mubr.bf16.mxu0 0
          %1499 = vmatmul.mubr.bf16.gmra.mrb[0].mxu0 %v1428
          %v1500 = vpop.f32.mrb[0].mxu0
          %v1501 = vadd.f32 0.0, %v1500
          %v1502 = vpop.f32.mrb[0].mxu0
          %v1503 = vpop.f32.mrb[0].mxu0
          %v1504 = vadd.f32 0.0, %v1503
          %v1505 = vpop.f32.mrb[0].mxu0
          %1506 = vmatprep.mubr.bf16.mxu0 0
          %1507 = vmatmul.mubr.bf16.gmra.mrb[0].mxu0 %v1431
          %v1508 = vpop.f32.mrb[0].mxu0
          %v1509 = vadd.f32 0.0, %v1508
          %v1510 = vpop.f32.mrb[0].mxu0
          %v1511 = vpop.f32.mrb[0].mxu0
          %v1512 = vadd.f32 0.0, %v1511
          %v1513 = vpop.f32.mrb[0].mxu0
          %1514 = vmatprep.mubr.bf16.mxu0 0
          %1515 = vmatmul.mubr.bf16.gmra.mrb[0].mxu0 %v1434
          %v1516 = vpop.f32.mrb[0].mxu0
          %v1517 = vadd.f32 0.0, %v1516
          %v1518 = vpop.f32.mrb[0].mxu0
          %v1519 = vpop.f32.mrb[0].mxu0
          %v1520 = vadd.f32 0.0, %v1519
          %v1521 = vpop.f32.mrb[0].mxu0
          %1522 = vmatprep.mubr.bf16.mxu0 0
          %1523 = vmatmul.mubr.bf16.gmra.mrb[0].mxu0 %v1437
          %v1524 = vpop.f32.mrb[0].mxu0
          %v1525 = vadd.f32 0.0, %v1524
          %v1526 = vpop.f32.mrb[0].mxu0
          %v1527 = vpop.f32.mrb[0].mxu0
          %v1528 = vadd.f32 0.0, %v1527
          %v1529 = vpop.f32.mrb[0].mxu0
          %1530 = vmatprep.mubr.bf16.mxu0 0
          %1531 = vmatmul.mubr.bf16.gmra.mrb[0].mxu0 %v1440
          %v1532 = vpop.f32.mrb[0].mxu0
          %v1533 = vadd.f32 0.0, %v1532
          %v1534 = vpop.f32.mrb[0].mxu0
          %v1535 = vpop.f32.mrb[0].mxu0
          %v1536 = vadd.f32 0.0, %v1535
          %v1537 = vpop.f32.mrb[0].mxu0
          %1538 = vdwg.mxu0
          %v1539 = vadd.f32 %v1358, %v1477
          %v1540 = vadd.f32 %v1359, %v1480
          %v1541 = vadd.f32 %v1360, %v1485
          %v1542 = vadd.f32 %v1361, %v1488
          %v1543 = vadd.f32 %v1362, %v1493
          %v1544 = vadd.f32 %v1363, %v1496
          %v1545 = vadd.f32 %v1364, %v1501
          %v1546 = vadd.f32 %v1365, %v1504
          %v1547 = vadd.f32 %v1366, %v1509
          %v1548 = vadd.f32 %v1367, %v1512
          %v1549 = vadd.f32 %v1368, %v1517
          %v1550 = vadd.f32 %v1369, %v1520
          %v1551 = vadd.f32 %v1370, %v1525
          %v1552 = vadd.f32 %v1371, %v1528
          %v1553 = vadd.f32 %v1372, %v1533
          %v1554 = vadd.f32 %v1373, %v1536
          %v1555 = vrot.slane %v1377, 2
          %v1556 = vrot.slane %v1380, 2
          %v1557 = vrot.slane %v1383, 2
          %v1558 = vrot.slane %v1386, 2
          %v1559 = vrot.slane %v1389, 2
          %v1560 = vrot.slane %v1392, 2
          %v1561 = vrot.slane %v1395, 2
          %v1562 = vrot.slane %v1398, 2
          %v1563 = vrot.slane %v1378, 2
          %v1564 = vrot.slane %v1381, 2
          %v1565 = vrot.slane %v1384, 2
          %v1566 = vrot.slane %v1387, 2
          %v1567 = vrot.slane %v1390, 2
          %v1568 = vrot.slane %v1393, 2
          %v1569 = vrot.slane %v1396, 2
          %v1570 = vrot.slane %v1399, 2
          %v1571 = vrot.slane %v1379, 2
          %v1572 = vrot.slane %v1382, 2
          %v1573 = vrot.slane %v1385, 2
          %v1574 = vrot.slane %v1388, 2
          %v1575 = vrot.slane %v1391, 2
          %v1576 = vrot.slane %v1394, 2
          %v1577 = vrot.slane %v1397, 2
          %v1578 = vrot.slane %v1400, 2
          %v1579 = vsel %vm327, %v1563, %v1571
          %v1580 = vsel %vm327, %v1564, %v1572
          %v1581 = vsel %vm327, %v1565, %v1573
          %v1582 = vsel %vm327, %v1566, %v1574
          %v1583 = vsel %vm327, %v1567, %v1575
          %v1584 = vsel %vm327, %v1568, %v1576
          %v1585 = vsel %vm327, %v1569, %v1577
          %v1586 = vsel %vm327, %v1570, %v1578
          %v1587 = vsel %vm327, %v1555, %v1563
          %v1588 = vsel %vm327, %v1556, %v1564
          %v1589 = vsel %vm327, %v1557, %v1565
          %v1590 = vsel %vm327, %v1558, %v1566
          %v1591 = vsel %vm327, %v1559, %v1567
          %v1592 = vsel %vm327, %v1560, %v1568
          %v1593 = vsel %vm327, %v1561, %v1569
          %v1594 = vsel %vm327, %v1562, %v1570
          %v1595 = vpack.c.bf16 %v1579, %v1587
          %v1596 = vpack.c.bf16 %v1580, %v1588
          %v1597 = vpack.c.bf16 %v1581, %v1589
          %v1598 = vpack.c.bf16 %v1582, %v1590
          %v1599 = vpack.c.bf16 %v1583, %v1591
          %v1600 = vpack.c.bf16 %v1584, %v1592
          %v1601 = vpack.c.bf16 %v1585, %v1593
          %v1602 = vpack.c.bf16 %v1586, %v1594
          %s1603 = scalar_lea.vmem %s248, 56
          %v1604 = vld [vmem:[%s1603] sm:$0xf]
          %v1605 = vld [vmem:[%s1603 + $0x4] sm:$0xf]
          %v1608 = vunpack.c.l.b16 %v1604
          %v1609 = vunpack.c.l.b16 %v1605
          %v1610 = vpack.c.b16 %v1609, %v1608
          %v1613 = vsel %vm361, %v1595, 0
          %v1616 = vsel %vm361, %v1596, 0
          %v1619 = vsel %vm361, %v1597, 0
          %v1622 = vsel %vm361, %v1598, 0
          %v1625 = vsel %vm361, %v1599, 0
          %v1628 = vsel %vm361, %v1600, 0
          %v1631 = vsel %vm361, %v1601, 0
          %v1634 = vsel %vm361, %v1602, 0
          %1636 = vmatprep.subr.bf16.mxu0 0
          %1637 = vmatpush1.bf16.msra.mxu0 %v1610
          %1638 = vmatprep.subr.bf16.mxu0 0
          %1639 = vmatpush1.bf16.msra.mxu0 0
          %1640 = vmatprep.subr.bf16.mxu0 0
          %1641 = vmatpush1.bf16.msra.mxu0 0
          %1642 = vmatprep.subr.bf16.mxu0 0
          %1643 = vmatpush1.bf16.msra.mxu0 0
          %1644 = vmatprep.subr.bf16.mxu0 0
          %1645 = vmatpush1.bf16.msra.mxu0 0
          %1646 = vmatprep.subr.bf16.mxu0 0
          %1647 = vmatpush1.bf16.msra.mxu0 0
          %1648 = vmatprep.subr.bf16.mxu0 0
          %1649 = vmatpush1.bf16.msra.mxu0 0
          %1650 = vmatprep.subr.bf16.mxu0 0
          %1651 = vmatpush1.bf16.msra.mxu0 0
          %1652 = vmatprep.subr.bf16.mxu0 0
          %1653 = vmatpush1.bf16.msra.mxu0 0
          %1654 = vmatprep.subr.bf16.mxu0 0
          %1655 = vmatpush1.bf16.msra.mxu0 0
          %1656 = vmatprep.subr.bf16.mxu0 0
          %1657 = vmatpush1.bf16.msra.mxu0 0
          %1658 = vmatprep.subr.bf16.mxu0 0
          %1659 = vmatpush1.bf16.msra.mxu0 0
          %1660 = vmatprep.subr.bf16.mxu0 0
          %1661 = vmatpush1.bf16.msra.mxu0 0
          %1662 = vmatprep.subr.bf16.mxu0 0
          %1663 = vmatpush1.bf16.msra.mxu0 0
          %1664 = vmatprep.subr.bf16.mxu0 0
          %1665 = vmatpush1.bf16.msra.mxu0 0
          %1666 = vmatprep.subr.bf16.mxu0 0
          %1667 = vmatpush1.bf16.msra.mxu0 0
          %1668 = vmatprep.mubr.bf16.mxu0 0
          %1669 = vmatmul.mubr.bf16.gmra.mrb[0].mxu0 %v1613
          %v1670 = vpop.f32.mrb[0].mxu0
          %v1671 = vadd.f32 0.0, %v1670
          %v1672 = vpop.f32.mrb[0].mxu0
          %v1673 = vpop.f32.mrb[0].mxu0
          %v1674 = vadd.f32 0.0, %v1673
          %v1675 = vpop.f32.mrb[0].mxu0
          %1676 = vmatprep.mubr.bf16.mxu0 0
          %1677 = vmatmul.mubr.bf16.gmra.mrb[0].mxu0 %v1616
          %v1678 = vpop.f32.mrb[0].mxu0
          %v1679 = vadd.f32 0.0, %v1678
          %v1680 = vpop.f32.mrb[0].mxu0
          %v1681 = vpop.f32.mrb[0].mxu0
          %v1682 = vadd.f32 0.0, %v1681
          %v1683 = vpop.f32.mrb[0].mxu0
          %1684 = vmatprep.mubr.bf16.mxu0 0
          %1685 = vmatmul.mubr.bf16.gmra.mrb[0].mxu0 %v1619
          %v1686 = vpop.f32.mrb[0].mxu0
          %v1687 = vadd.f32 0.0, %v1686
          %v1688 = vpop.f32.mrb[0].mxu0
          %v1689 = vpop.f32.mrb[0].mxu0
          %v1690 = vadd.f32 0.0, %v1689
          %v1691 = vpop.f32.mrb[0].mxu0
          %1692 = vmatprep.mubr.bf16.mxu0 0
          %1693 = vmatmul.mubr.bf16.gmra.mrb[0].mxu0 %v1622
          %v1694 = vpop.f32.mrb[0].mxu0
          %v1695 = vadd.f32 0.0, %v1694
          %v1696 = vpop.f32.mrb[0].mxu0
          %v1697 = vpop.f32.mrb[0].mxu0
          %v1698 = vadd.f32 0.0, %v1697
          %v1699 = vpop.f32.mrb[0].mxu0
          %1700 = vmatprep.mubr.bf16.mxu0 0
          %1701 = vmatmul.mubr.bf16.gmra.mrb[0].mxu0 %v1625
          %v1702 = vpop.f32.mrb[0].mxu0
          %v1703 = vadd.f32 0.0, %v1702
          %v1704 = vpop.f32.mrb[0].mxu0
          %v1705 = vpop.f32.mrb[0].mxu0
          %v1706 = vadd.f32 0.0, %v1705
          %v1707 = vpop.f32.mrb[0].mxu0
          %1708 = vmatprep.mubr.bf16.mxu0 0
          %1709 = vmatmul.mubr.bf16.gmra.mrb[0].mxu0 %v1628
          %v1710 = vpop.f32.mrb[0].mxu0
          %v1711 = vadd.f32 0.0, %v1710
          %v1712 = vpop.f32.mrb[0].mxu0
          %v1713 = vpop.f32.mrb[0].mxu0
          %v1714 = vadd.f32 0.0, %v1713
          %v1715 = vpop.f32.mrb[0].mxu0
          %1716 = vmatprep.mubr.bf16.mxu0 0
          %1717 = vmatmul.mubr.bf16.gmra.mrb[0].mxu0 %v1631
          %v1718 = vpop.f32.mrb[0].mxu0
          %v1719 = vadd.f32 0.0, %v1718
          %v1720 = vpop.f32.mrb[0].mxu0
          %v1721 = vpop.f32.mrb[0].mxu0
          %v1722 = vadd.f32 0.0, %v1721
          %v1723 = vpop.f32.mrb[0].mxu0
          %1724 = vmatprep.mubr.bf16.mxu0 0
          %1725 = vmatmul.mubr.bf16.gmra.mrb[0].mxu0 %v1634
          %v1726 = vpop.f32.mrb[0].mxu0
          %v1727 = vadd.f32 0.0, %v1726
          %v1728 = vpop.f32.mrb[0].mxu0
          %v1729 = vpop.f32.mrb[0].mxu0
          %v1730 = vadd.f32 0.0, %v1729
          %v1731 = vpop.f32.mrb[0].mxu0
          %1732 = vdwg.mxu0
          %v1733 = vadd.f32 %v1539, %v1671
          %v1734 = vadd.f32 %v1540, %v1674
          %v1735 = vadd.f32 %v1541, %v1679
          %v1736 = vadd.f32 %v1542, %v1682
          %v1737 = vadd.f32 %v1543, %v1687
          %v1738 = vadd.f32 %v1544, %v1690
          %v1739 = vadd.f32 %v1545, %v1695
          %v1740 = vadd.f32 %v1546, %v1698
          %v1741 = vadd.f32 %v1547, %v1703
          %v1742 = vadd.f32 %v1548, %v1706
          %v1743 = vadd.f32 %v1549, %v1711
          %v1744 = vadd.f32 %v1550, %v1714
          %v1745 = vadd.f32 %v1551, %v1719
          %v1746 = vadd.f32 %v1552, %v1722
          %v1747 = vadd.f32 %v1553, %v1727
          %v1748 = vadd.f32 %v1554, %v1730
          %v1749 = vrot.slane %v1377, 4
          %v1750 = vrot.slane %v1380, 4
          %v1751 = vrot.slane %v1383, 4
          %v1752 = vrot.slane %v1386, 4
          %v1753 = vrot.slane %v1389, 4
          %v1754 = vrot.slane %v1392, 4
          %v1755 = vrot.slane %v1395, 4
          %v1756 = vrot.slane %v1398, 4
          %v1757 = vrot.slane %v1378, 4
          %v1758 = vrot.slane %v1381, 4
          %v1759 = vrot.slane %v1384, 4
          %v1760 = vrot.slane %v1387, 4
          %v1761 = vrot.slane %v1390, 4
          %v1762 = vrot.slane %v1393, 4
          %v1763 = vrot.slane %v1396, 4
          %v1764 = vrot.slane %v1399, 4
          %v1765 = vrot.slane %v1379, 4
          %v1766 = vrot.slane %v1382, 4
          %v1767 = vrot.slane %v1385, 4
          %v1768 = vrot.slane %v1388, 4
          %v1769 = vrot.slane %v1391, 4
          %v1770 = vrot.slane %v1394, 4
          %v1771 = vrot.slane %v1397, 4
          %v1772 = vrot.slane %v1400, 4
          %v1773 = vsel %vm634, %v1757, %v1765
          %v1774 = vsel %vm634, %v1758, %v1766
          %v1775 = vsel %vm634, %v1759, %v1767
          %v1776 = vsel %vm634, %v1760, %v1768
          %v1777 = vsel %vm634, %v1761, %v1769
          %v1778 = vsel %vm634, %v1762, %v1770
          %v1779 = vsel %vm634, %v1763, %v1771
          %v1780 = vsel %vm634, %v1764, %v1772
          %v1781 = vsel %vm634, %v1749, %v1757
          %v1782 = vsel %vm634, %v1750, %v1758
          %v1783 = vsel %vm634, %v1751, %v1759
          %v1784 = vsel %vm634, %v1752, %v1760
          %v1785 = vsel %vm634, %v1753, %v1761
          %v1786 = vsel %vm634, %v1754, %v1762
          %v1787 = vsel %vm634, %v1755, %v1763
          %v1788 = vsel %vm634, %v1756, %v1764
          %v1789 = vpack.c.bf16 %v1773, %v1781
          %v1790 = vpack.c.bf16 %v1774, %v1782
          %v1791 = vpack.c.bf16 %v1775, %v1783
          %v1792 = vpack.c.bf16 %v1776, %v1784
          %v1793 = vpack.c.bf16 %v1777, %v1785
          %v1794 = vpack.c.bf16 %v1778, %v1786
          %v1795 = vpack.c.bf16 %v1779, %v1787
          %v1796 = vpack.c.bf16 %v1780, %v1788
          %s1797 = scalar_lea.vmem %s248, 64
          %v1798 = vld [vmem:[%s1797] sm:$0xf]
          %v1799 = vld [vmem:[%s1797 + $0x4] sm:$0xf]
          %v1802 = vunpack.c.l.b16 %v1798
          %v1803 = vunpack.c.l.b16 %v1799
          %v1804 = vpack.c.b16 %v1803, %v1802
          %v1807 = vsel %vm361, %v1789, 0
          %v1810 = vsel %vm361, %v1790, 0
          %v1813 = vsel %vm361, %v1791, 0
          %v1816 = vsel %vm361, %v1792, 0
          %v1819 = vsel %vm361, %v1793, 0
          %v1822 = vsel %vm361, %v1794, 0
          %v1825 = vsel %vm361, %v1795, 0
          %v1828 = vsel %vm361, %v1796, 0
          %1830 = vmatprep.subr.bf16.mxu0 0
          %1831 = vmatpush1.bf16.msra.mxu0 %v1804
          %1832 = vmatprep.subr.bf16.mxu0 0
          %1833 = vmatpush1.bf16.msra.mxu0 0
          %1834 = vmatprep.subr.bf16.mxu0 0
          %1835 = vmatpush1.bf16.msra.mxu0 0
          %1836 = vmatprep.subr.bf16.mxu0 0
          %1837 = vmatpush1.bf16.msra.mxu0 0
          %1838 = vmatprep.subr.bf16.mxu0 0
          %1839 = vmatpush1.bf16.msra.mxu0 0
          %1840 = vmatprep.subr.bf16.mxu0 0
          %1841 = vmatpush1.bf16.msra.mxu0 0
          %1842 = vmatprep.subr.bf16.mxu0 0
          %1843 = vmatpush1.bf16.msra.mxu0 0
          %1844 = vmatprep.subr.bf16.mxu0 0
          %1845 = vmatpush1.bf16.msra.mxu0 0
          %1846 = vmatprep.subr.bf16.mxu0 0
          %1847 = vmatpush1.bf16.msra.mxu0 0
          %1848 = vmatprep.subr.bf16.mxu0 0
          %1849 = vmatpush1.bf16.msra.mxu0 0
          %1850 = vmatprep.subr.bf16.mxu0 0
          %1851 = vmatpush1.bf16.msra.mxu0 0
          %1852 = vmatprep.subr.bf16.mxu0 0
          %1853 = vmatpush1.bf16.msra.mxu0 0
          %1854 = vmatprep.subr.bf16.mxu0 0
          %1855 = vmatpush1.bf16.msra.mxu0 0
          %1856 = vmatprep.subr.bf16.mxu0 0
          %1857 = vmatpush1.bf16.msra.mxu0 0
          %1858 = vmatprep.subr.bf16.mxu0 0
          %1859 = vmatpush1.bf16.msra.mxu0 0
          %1860 = vmatprep.subr.bf16.mxu0 0
          %1861 = vmatpush1.bf16.msra.mxu0 0
          %1862 = vmatprep.mubr.bf16.mxu0 0
          %1863 = vmatmul.mubr.bf16.gmra.mrb[0].mxu0 %v1807
          %v1864 = vpop.f32.mrb[0].mxu0
          %v1865 = vadd.f32 0.0, %v1864
          %v1866 = vpop.f32.mrb[0].mxu0
          %v1867 = vpop.f32.mrb[0].mxu0
          %v1868 = vadd.f32 0.0, %v1867
          %v1869 = vpop.f32.mrb[0].mxu0
          %1870 = vmatprep.mubr.bf16.mxu0 0
          %1871 = vmatmul.mubr.bf16.gmra.mrb[0].mxu0 %v1810
          %v1872 = vpop.f32.mrb[0].mxu0
          %v1873 = vadd.f32 0.0, %v1872
          %v1874 = vpop.f32.mrb[0].mxu0
          %v1875 = vpop.f32.mrb[0].mxu0
          %v1876 = vadd.f32 0.0, %v1875
          %v1877 = vpop.f32.mrb[0].mxu0
          %1878 = vmatprep.mubr.bf16.mxu0 0
          %1879 = vmatmul.mubr.bf16.gmra.mrb[0].mxu0 %v1813
          %v1880 = vpop.f32.mrb[0].mxu0
          %v1881 = vadd.f32 0.0, %v1880
          %v1882 = vpop.f32.mrb[0].mxu0
          %v1883 = vpop.f32.mrb[0].mxu0
          %v1884 = vadd.f32 0.0, %v1883
          %v1885 = vpop.f32.mrb[0].mxu0
          %1886 = vmatprep.mubr.bf16.mxu0 0
          %1887 = vmatmul.mubr.bf16.gmra.mrb[0].mxu0 %v1816
          %v1888 = vpop.f32.mrb[0].mxu0
          %v1889 = vadd.f32 0.0, %v1888
          %v1890 = vpop.f32.mrb[0].mxu0
          %v1891 = vpop.f32.mrb[0].mxu0
          %v1892 = vadd.f32 0.0, %v1891
          %v1893 = vpop.f32.mrb[0].mxu0
          %1894 = vmatprep.mubr.bf16.mxu0 0
          %1895 = vmatmul.mubr.bf16.gmra.mrb[0].mxu0 %v1819
          %v1896 = vpop.f32.mrb[0].mxu0
          %v1897 = vadd.f32 0.0, %v1896
          %v1898 = vpop.f32.mrb[0].mxu0
          %v1899 = vpop.f32.mrb[0].mxu0
          %v1900 = vadd.f32 0.0, %v1899
          %v1901 = vpop.f32.mrb[0].mxu0
          %1902 = vmatprep.mubr.bf16.mxu0 0
          %1903 = vmatmul.mubr.bf16.gmra.mrb[0].mxu0 %v1822
          %v1904 = vpop.f32.mrb[0].mxu0
          %v1905 = vadd.f32 0.0, %v1904
          %v1906 = vpop.f32.mrb[0].mxu0
          %v1907 = vpop.f32.mrb[0].mxu0
          %v1908 = vadd.f32 0.0, %v1907
          %v1909 = vpop.f32.mrb[0].mxu0
          %1910 = vmatprep.mubr.bf16.mxu0 0
          %1911 = vmatmul.mubr.bf16.gmra.mrb[0].mxu0 %v1825
          %v1912 = vpop.f32.mrb[0].mxu0
          %v1913 = vadd.f32 0.0, %v1912
          %v1914 = vpop.f32.mrb[0].mxu0
          %v1915 = vpop.f32.mrb[0].mxu0
          %v1916 = vadd.f32 0.0, %v1915
          %v1917 = vpop.f32.mrb[0].mxu0
          %1918 = vmatprep.mubr.bf16.mxu0 0
          %1919 = vmatmul.mubr.bf16.gmra.mrb[0].mxu0 %v1828
          %v1920 = vpop.f32.mrb[0].mxu0
          %v1921 = vadd.f32 0.0, %v1920
          %v1922 = vpop.f32.mrb[0].mxu0
          %v1923 = vpop.f32.mrb[0].mxu0
          %v1924 = vadd.f32 0.0, %v1923
          %v1925 = vpop.f32.mrb[0].mxu0
          %1926 = vdwg.mxu0
          %v1927 = vadd.f32 %v1733, %v1865
          %v1928 = vadd.f32 %v1734, %v1868
          %v1929 = vadd.f32 %v1735, %v1873
          %v1930 = vadd.f32 %v1736, %v1876
          %v1931 = vadd.f32 %v1737, %v1881
          %v1932 = vadd.f32 %v1738, %v1884
          %v1933 = vadd.f32 %v1739, %v1889
          %v1934 = vadd.f32 %v1740, %v1892
          %v1935 = vadd.f32 %v1741, %v1897
          %v1936 = vadd.f32 %v1742, %v1900
          %v1937 = vadd.f32 %v1743, %v1905
          %v1938 = vadd.f32 %v1744, %v1908
          %v1939 = vadd.f32 %v1745, %v1913
          %v1940 = vadd.f32 %v1746, %v1916
          %v1941 = vadd.f32 %v1747, %v1921
          %v1942 = vadd.f32 %v1748, %v1924
          %v1944 = vlaneseq
          %v1945 = vshrl.u32 %v1944, 7
          %v1946 = vsub.s32 0, %v1945
          %v1947 = vrot.slane %v256, %v1946
          %v1949 = vmul.f32 %v1927, %v1947
          %v1950 = vmul.f32 %v1928, %v1947
          %v1951 = vmul.f32 %v1929, %v1947
          %v1952 = vmul.f32 %v1930, %v1947
          %v1953 = vmul.f32 %v1931, %v1947
          %v1954 = vmul.f32 %v1932, %v1947
          %v1955 = vmul.f32 %v1933, %v1947
          %v1956 = vmul.f32 %v1934, %v1947
          %v1957 = vmul.f32 %v1935, %v1947
          %v1958 = vmul.f32 %v1936, %v1947
          %v1959 = vmul.f32 %v1937, %v1947
          %v1960 = vmul.f32 %v1938, %v1947
          %v1961 = vmul.f32 %v1939, %v1947
          %v1962 = vmul.f32 %v1940, %v1947
          %v1963 = vmul.f32 %v1941, %v1947
          %v1964 = vmul.f32 %v1942, %v1947
          %v1966 = vlaneseq
          %v1967 = vshrl.u32 %v1966, 7
          %v1968 = vsub.s32 0, %v1967
          %v1969 = vrot.slane %v257, %v1968
          %v1971 = vadd.f32 %v1949, %v1969
          %v1972 = vadd.f32 %v1950, %v1969
          %v1973 = vadd.f32 %v1951, %v1969
          %v1974 = vadd.f32 %v1952, %v1969
          %v1975 = vadd.f32 %v1953, %v1969
          %v1976 = vadd.f32 %v1954, %v1969
          %v1977 = vadd.f32 %v1955, %v1969
          %v1978 = vadd.f32 %v1956, %v1969
          %v1979 = vadd.f32 %v1957, %v1969
          %v1980 = vadd.f32 %v1958, %v1969
          %v1981 = vadd.f32 %v1959, %v1969
          %v1982 = vadd.f32 %v1960, %v1969
          %v1983 = vadd.f32 %v1961, %v1969
          %v1984 = vadd.f32 %v1962, %v1969
          %v1985 = vadd.f32 %v1963, %v1969
          %v1986 = vadd.f32 %v1964, %v1969
          %v1987 = vmax.f32 %v1971, 0.0
          %v1988 = vmax.f32 %v1972, 0.0
          %v1989 = vmax.f32 %v1973, 0.0
          %v1990 = vmax.f32 %v1974, 0.0
          %v1991 = vmax.f32 %v1975, 0.0
          %v1992 = vmax.f32 %v1976, 0.0
          %v1993 = vmax.f32 %v1977, 0.0
          %v1994 = vmax.f32 %v1978, 0.0
          %v1995 = vmax.f32 %v1979, 0.0
          %v1996 = vmax.f32 %v1980, 0.0
          %v1997 = vmax.f32 %v1981, 0.0
          %v1998 = vmax.f32 %v1982, 0.0
          %v1999 = vmax.f32 %v1983, 0.0
          %v2000 = vmax.f32 %v1984, 0.0
          %v2001 = vmax.f32 %v1985, 0.0
          %v2002 = vmax.f32 %v1986, 0.0
          %s2003 = smul.u32 %s264, 16
          %s2004 = scalar_lea.vmem %s239, %s2003 [#allocation2]
          %2005 = vst [vmem:[%s2004] sm:$0xff] %v1987
          %2006 = vst [vmem:[%s2004 + $0x8] sm:$0xff] %v1988
          %2007 = vst [vmem:[%s2004 + $0x10] sm:$0xff] %v1989
          %2008 = vst [vmem:[%s2004 + $0x18] sm:$0xff] %v1990
          %2009 = vst [vmem:[%s2004 + $0x20] sm:$0xff] %v1991
          %2010 = vst [vmem:[%s2004 + $0x28] sm:$0xff] %v1992
          %2011 = vst [vmem:[%s2004 + $0x30] sm:$0xff] %v1993
          %2012 = vst [vmem:[%s2004 + $0x38] sm:$0xff] %v1994
          %2013 = vst [vmem:[%s2004 + $0x40] sm:$0xff] %v1995
          %2014 = vst [vmem:[%s2004 + $0x48] sm:$0xff] %v1996
          %2015 = vst [vmem:[%s2004 + $0x50] sm:$0xff] %v1997
          %2016 = vst [vmem:[%s2004 + $0x58] sm:$0xff] %v1998
          %2017 = vst [vmem:[%s2004 + $0x60] sm:$0xff] %v1999
          %2018 = vst [vmem:[%s2004 + $0x68] sm:$0xff] %v2000
          %2019 = vst [vmem:[%s2004 + $0x70] sm:$0xff] %v2001
          %2020 = vst [vmem:[%s2004 + $0x78] sm:$0xff] %v2002
        $region41: #{tpu_custom_call.1} parent=35 // loop_footer
          %s263 = sadd.s32 1, %s259
        $region42: #{tpu_custom_call.1} parent=35 // loop_footer_branch
          %258 = sbr.rel target = $region38
        $region43: #{tpu_custom_call.1} parent=35 // loop_exit
          _
        %s2021 = sand.u32 %s144, 1
        %s2022 = scalar_lea.sflag [#allocation3], %s2021
        %s2023 = sand.u32 %s144, 1
        %s2024 = smul.addr %s2023, 256
        %s2025 = scalar_lea.vmem [#allocation2], %s2024
        // Predicated region
        $region44: #{tpu_custom_call.1} parent=35 // pred_check
          %p2026 = pneg %p154
        $region45: #{tpu_custom_call.1} parent=35 // pred_check_branch
          %2028 = sbr.rel (%p2026) target = $region47
        $region46: #{tpu_custom_call.1} parent=35 // pred_region
          %s2030 = ssub.s32 4096, 4096
          %2031 = vsyncadd %s2022, %s2030
          %s2032 = smul.addr %s22, 32
          %s2033 = sadd.s32 %s23, %s2032
          %s2034 = smul.addr %s2033, 128
          %s2035 = scalar_lea.hbm %s4, %s2034
          %s2036 = sshll.u32 %s2025, 4
          %s2037 = int_to_ptr.vmem [resolvable:$true] %s2036
          %2042 = dma.vmem_to_hbm [thread:$0]  %s2037, 4096, %s2035, %s2022, 128, 128, 8
        $region47: #{tpu_custom_call.1} parent=35 // pred_fallthru
          _
      $region36: #{tpu_custom_call.1} parent=5 // pred_fallthru
        _
      %p2043 = scmp.le.s32.totalorder 2, %s13
      // Predicated region
      $region48: #{tpu_custom_call.1} parent=5 // pred_check
        %p2044 = pneg %p2043
      $region49: #{tpu_custom_call.1} parent=5 // pred_check_branch
        %2046 = sbr.rel (%p2044) target = $region51
      $region50: #{tpu_custom_call.1} parent=5 // pred_region
        %s2047 = ssub.s32 %s13, 2
        // Predicated region
        $region52: #{tpu_custom_call.1} parent=50 // pred_check
          %p2048 = pneg %p160
        $region53: #{tpu_custom_call.1} parent=50 // pred_check_branch
          %2050 = sbr.rel (%p2048) target = $region55
        $region54: #{tpu_custom_call.1} parent=50 // pred_region
          %s2051 = sand.u32 %s145, 1
          %s2052 = scalar_lea.sflag [#allocation3], %s2051
          %s2053 = sand.u32 %s145, 1
          %s2054 = smul.addr %s2053, 256
          %s2055 = scalar_lea.vmem [#allocation2], %s2054
          %2056 = dma.done %s2052, 4096
        $region55: #{tpu_custom_call.1} parent=50 // pred_fallthru
          _
      $region51: #{tpu_custom_call.1} parent=5 // pred_fallthru
        _
    $region6: #{tpu_custom_call.1} parent=1 // loop_footer
      %s17 = sadd.s32 1, %s13
    $region7: #{tpu_custom_call.1} parent=1 // loop_footer_branch
      %12 = sbr.rel target = $region3
    $region8: #{tpu_custom_call.1} parent=1 // loop_exit
      _
    %2057 = vsyncpa [#allocation3], 1
    %s2058 = scalar_lea.sflag [#allocation3], 1
    %2059 = vsyncpa %s2058, 1

</llo_original>
